<compile_context>
chip_gen: v6e
topology: v6e:2x2x1
jax: 0.10.0
libtpu: 0.0.40
codegen_flags: <defaults>
</compile_context>

<pallas_src>
import jax
import jax.numpy as jnp
from jax.experimental import pallas as pl
from jax.experimental.pallas import tpu as pltpu

HIDDEN = 64
IN_DIM = 18
OUT_DIM = 6
B_PAD = 8          # one full sublane group


# -------------------- one-time parameter fusion (outside the jitted forward) --------------------
def prepare_params(params):
    """Fuse raw GRU weights/biases into the kernel's block layout.

    Column-block layout (8 blocks of H lanes = 512 lanes) of the fused
    pre-activation S used inside the kernel:
        0: r1-pre   1: r2-pre   2: z1-pre   3: z2-pre
        4: Q1 = gh1_n + b_hn1   5: Q2 = gh2_n + b_hn2
        6: P1 = gi1_n + b_in1   7: P2 = gi2_n + b_in2
    """
    (wih1, whh1, bih1, bhh1, wih2, whh2, bih2, bhh2, wfc, bfc) = params
    H = HIDDEN
    Z = jnp.zeros

    # gate slices (torch order r, z, n); weights stored transposed (in_dim, 3H)
    w1r, w1z, w1n = wih1[:, :H], wih1[:, H:2 * H], wih1[:, 2 * H:]
    h1r, h1z, h1n = whh1[:, :H], whh1[:, H:2 * H], whh1[:, 2 * H:]
    w2r, w2z, w2n = wih2[:, :H], wih2[:, H:2 * H], wih2[:, 2 * H:]
    h2r, h2z, h2n = whh2[:, :H], whh2[:, H:2 * H], whh2[:, 2 * H:]

    # input-side projection (only layer-1 sees x): (D, 8H)
    zDH = Z((IN_DIM, H), jnp.float32)
    wih_ext = jnp.concatenate([w1r, zDH, w1z, zDH, zDH, zDH, w1n, zDH], axis=1)

    # fused recurrent weight, LHS is hcat = [h1 | h2]: (2H, 8H)
    zHH = Z((H, H), jnp.float32)
    wf_top = jnp.concatenate([h1r, w2r, h1z, w2z, h1n, zHH, zHH, w2n], axis=1)
    wf_bot = jnp.concatenate([zHH, h2r, zHH, h2z, zHH, h2n, zHH, zHH], axis=1)
    wf = jnp.concatenate([wf_top, wf_bot], axis=0)

    # all biases folded into one (1, 8H) vector added in the prologue
    b1r, b1z, b1n = bih1[:, :H], bih1[:, H:2 * H], bih1[:, 2 * H:]
    c1r, c1z, c1n = bhh1[:, :H], bhh1[:, H:2 * H], bhh1[:, 2 * H:]
    b2r, b2z, b2n = bih2[:, :H], bih2[:, H:2 * H], bih2[:, 2 * H:]
    c2r, c2z, c2n = bhh2[:, :H], bhh2[:, H:2 * H], bhh2[:, 2 * H:]
    bias = jnp.concatenate([b1r + c1r, b2r + c2r, b1z + c1z, b2z + c2z,
                            c1n, c2n, b1n, b2n], axis=1)           # (1, 8H)

    # final projection applied to full hcat (top half zeroed -> uses only h2)
    wfc_ext = jnp.concatenate([Z((H, OUT_DIM), jnp.float32), wfc], axis=0)
    return wih_ext, bias, wf, wfc_ext, bfc


# -------------------- kernel --------------------
def _make_kernel(T, B, H):
    H2, H4, H6, H8 = 2 * H, 4 * H, 6 * H, 8 * H

    def gru_cell(s, hcat_old):
        # s: (B, 8H) fused pre-activations; hcat_old: (B, 2H) = [h1_prev | h2_prev]
        rz = jax.nn.sigmoid(s[:, :H4])              # [r1 | r2 | z1 | z2]
        r = rz[:, :H2]                              # [r1 | r2]   (one vreg)
        z = rz[:, H2:]                              # [z1 | z2]   (one vreg)
        q = s[:, H4:H6]                             # [gh1_n+bhn1 | gh2_n+bhn2]
        p = s[:, H6:]                               # [gi1_n+bin1 | gi2_n+bin2]
        n = jnp.tanh(p + r * q)                     # [n1 | n2]
        return n + z * (hcat_old - n)               # [h1_new | h2_new]

    def kernel(x_ref, wih_ref, bias_ref, wf_ref, wfc_ref, bfc_ref, out_ref):
        # ---- prologue: layer-1 input projection for ALL (T+1) steps at once ----
        # ((T+1)*B, 18) @ (18, 8H); every bias is folded in here.
        g_all = (jnp.dot(x_ref[...], wih_ref[...],
                         preferred_element_type=jnp.float32)
                 + bias_ref[...])                   # ((T+1)*B, 8H)

        wf = wf_ref[...]                            # (2H, 8H), loop-invariant

        # ---- step 0: h1(-1)=h2(-1)=0 -> recurrent matmul contributes nothing ----
        lane = jax.lax.broadcasted_iota(jnp.int32, (B, H2), 1)
        h0 = gru_cell(g_all[:B, :], jnp.zeros((B, H2), jnp.float32))
        hcat = jnp.where(lane < H, h0, 0.0)         # [h1(0) | 0]

        # ---- recurrence: one fused matmul per time step, fully unrolled ----
        for t in range(T):
            big = jnp.dot(hcat, wf, preferred_element_type=jnp.float32)
            s = big + g_all[(t + 1) * B:(t + 2) * B, :]     # static, vreg-aligned
            hcat = gru_cell(s, hcat)                # -> [h1(t+1) | h2(t)]
        # after the last ("flush") step: hcat = [junk | h2(T-1)]

        # ---- final projection on h2(T-1) (top half of wfc_ext is zero) ----
        out_ref[...] = (jnp.dot(hcat, wfc_ref[...],
                                preferred_element_type=jnp.float32)
                        + bfc_ref[...])

    return kernel


# -------------------- forward wrapper --------------------
@jax.jit
def my_gru_forward(x_btd, prepared):
    """x_btd: (B, T, 18) float32 -> (B, 6) float32."""
    wih_ext, bias, wf, wfc_ext, bfc = prepared
    B, T, D = x_btd.shape
    H = HIDDEN
    H8 = 8 * H

    # time-major, batch padded to a full sublane group, plus one zero "flush"
    # time step so the last recurrence iteration reads a valid row block.
    x_tbd = jnp.transpose(x_btd.astype(jnp.float32), (1, 0, 2))   # (T, B, D)
    x_pad = jnp.zeros((T + 1, B_PAD, D), jnp.float32)
    x_pad = x_pad.at[:T, :B, :].set(x_tbd)
    x_flat = x_pad.reshape((T + 1) * B_PAD, D)

    kernel = _make_kernel(T, B_PAD, H)
    full = lambda i: (0, 0)

    out = pl.pallas_call(
        kernel,
        out_shape=jax.ShapeDtypeStruct((B_PAD, OUT_DIM), jnp.float32),
        grid_spec=pltpu.PrefetchScalarGridSpec(
            num_scalar_prefetch=0,
            grid=(1,),                                     # single invocation
            in_specs=[
                pl.BlockSpec(((T + 1) * B_PAD, D), full),  # X (time-major, padded)
                pl.BlockSpec((D, H8), full),               # fused input projection
                pl.BlockSpec((1, H8), full),               # fused biases
                pl.BlockSpec((2 * H, H8), full),           # fused recurrent weight
                pl.BlockSpec((2 * H, OUT_DIM), full),      # fc weight (h2 half)
                pl.BlockSpec((1, OUT_DIM), full),          # fc bias
            ],
            out_specs=pl.BlockSpec((B_PAD, OUT_DIM), full),
        ),
        compiler_params=pltpu.CompilerParams(
            dimension_semantics=("arbitrary",)),
    )(x_flat, wih_ext, bias, wf, wfc_ext, bfc)
    return out[:B]


# -------------------- parameter init (deterministic, torch-style) --------------------
def init_params(key):
    bound = 1.0 / jnp.sqrt(jnp.float32(HIDDEN))
    ks = jax.random.split(key, 10)
    u = lambda k, shape: jax.random.uniform(k, shape, jnp.float32, -bound, bound)
    H3 = 3 * HIDDEN
    # stored transposed: (in_dim, 3H), gate order [r, z, n] as in torch.
    wih1 = u(ks[0], (IN_DIM, H3))
    whh1 = u(ks[1], (HIDDEN, H3))
    bih1 = u(ks[2], (1, H3))
    bhh1 = u(ks[3], (1, H3))
    wih2 = u(ks[4], (HIDDEN, H3))
    whh2 = u(ks[5], (HIDDEN, H3))
    bih2 = u(ks[6], (1, H3))
    bhh2 = u(ks[7], (1, H3))
    wfc = u(ks[8], (HIDDEN, OUT_DIM))
    bfc = u(ks[9], (1, OUT_DIM))
    return (wih1, whh1, bih1, bhh1, wih2, whh2, bih2, bhh2, wfc, bfc)


# -------------------- pure-JAX reference (torch.nn.GRU semantics) --------------------
def _gru_layer_ref(x_btd, wih, whh, bih, bhh):
    B, T, D = x_btd.shape
    H = whh.shape[0]

    def step(h, xt):
        gi = xt @ wih + bih
        gh = h @ whh + bhh
        r = jax.nn.sigmoid(gi[:, :H] + gh[:, :H])
        z = jax.nn.sigmoid(gi[:, H:2 * H] + gh[:, H:2 * H])
        n = jnp.tanh(gi[:, 2 * H:] + r * gh[:, 2 * H:])
        h_new = (1.0 - z) * n + z * h
        return h_new, h_new

    h0 = jnp.zeros((B, H), jnp.float32)
    _, ys = jax.lax.scan(step, h0, jnp.transpose(x_btd, (1, 0, 2)))
    return jnp.transpose(ys, (1, 0, 2))


def my_gru_reference(x_btd, params):
    (wih1, whh1, bih1, bhh1, wih2, whh2, bih2, bhh2, wfc, bfc) = params
    y1 = _gru_layer_ref(x_btd, wih1, whh1, bih1, bhh1)
    y2 = _gru_layer_ref(y1, wih2, whh2, bih2, bhh2)
    return y2[:, -1, :] @ wfc + bfc


if __name__ == "__main__":
    key = jax.random.PRNGKey(0)
    k_param, k_x = jax.random.split(key)

    B, T = 2, 8
    params = init_params(k_param)
    prepared = prepare_params(params)          # one-time weight/bias fusion
    x = jax.random.normal(k_x, (B, T, IN_DIM), jnp.float32)

    out = my_gru_forward(x, prepared)
    out = jax.block_until_ready(out)

    ref = my_gru_reference(x, params)
    assert out.shape == (B, OUT_DIM)
    assert jnp.allclose(out, ref, atol=1e-5, rtol=1e-5), "mismatch vs reference"

    print("KERNEL_OK")
</pallas_src>

<mosaic_0001>
module attributes {stable_mosaic.version = 11 : i64} {
  func.func @kernel(%arg0: i32, %arg1: memref<72x18xf32, #tpu.memory_space<vmem>>, %arg2: memref<18x512xf32, #tpu.memory_space<vmem>>, %arg3: memref<1x512xf32, #tpu.memory_space<vmem>>, %arg4: memref<128x512xf32, #tpu.memory_space<vmem>>, %arg5: memref<128x6xf32, #tpu.memory_space<vmem>>, %arg6: memref<1x6xf32, #tpu.memory_space<vmem>>, %arg7: memref<8x6xf32, #tpu.memory_space<vmem>>) attributes {dimension_semantics = [#tpu.dimension_semantics<arbitrary>], iteration_bounds = array<i64: 1>, scalar_prefetch = 0 : i64, scratch_operands = 0 : i64, tpu.core_type = #tpu.core_type<tc>, window_params = [{pipeline_mode = #tpu.pipeline_mode<synchronous>, transform_indices = @transform_0, window_bounds = array<i64: 72, 18>}, {pipeline_mode = #tpu.pipeline_mode<synchronous>, transform_indices = @transform_1, window_bounds = array<i64: 18, 512>}, {pipeline_mode = #tpu.pipeline_mode<synchronous>, transform_indices = @transform_2, window_bounds = array<i64: 1, 512>}, {pipeline_mode = #tpu.pipeline_mode<synchronous>, transform_indices = @transform_3, window_bounds = array<i64: 128, 512>}, {pipeline_mode = #tpu.pipeline_mode<synchronous>, transform_indices = @transform_4, window_bounds = array<i64: 128, 6>}, {pipeline_mode = #tpu.pipeline_mode<synchronous>, transform_indices = @transform_5, window_bounds = array<i64: 1, 6>}, {pipeline_mode = #tpu.pipeline_mode<synchronous>, transform_indices = @transform_6, window_bounds = array<i64: 8, 6>}]} {
    %c0 = arith.constant 0 : index
    %c0_0 = arith.constant 0 : index
    %0 = vector.load %arg1[%c0, %c0_0] : memref<72x18xf32, #tpu.memory_space<vmem>>, vector<72x18xf32>
    %c0_1 = arith.constant 0 : index
    %c0_2 = arith.constant 0 : index
    %1 = vector.load %arg2[%c0_1, %c0_2] : memref<18x512xf32, #tpu.memory_space<vmem>>, vector<18x512xf32>
    %cst = arith.constant dense<0.000000e+00> : vector<72x512xf32>
    %2 = tpu.matmul %0, %1, %cst {dimension_numbers = #tpu.dot_dimension_numbers<[1], [0], [0], [1], [0, 0, 1, 1], [], []>} : vector<72x18xf32>, vector<18x512xf32>, vector<72x512xf32> -> vector<72x512xf32>
    %c0_3 = arith.constant 0 : index
    %c0_4 = arith.constant 0 : index
    %3 = vector.load %arg3[%c0_3, %c0_4] : memref<1x512xf32, #tpu.memory_space<vmem>>, vector<1x512xf32>
    %4 = vector.broadcast %3 : vector<1x512xf32> to vector<72x512xf32>
    %5 = arith.addf %2, %4 : vector<72x512xf32>
    %c0_5 = arith.constant 0 : index
    %c0_6 = arith.constant 0 : index
    %6 = vector.load %arg4[%c0_5, %c0_6] : memref<128x512xf32, #tpu.memory_space<vmem>>, vector<128x512xf32>
    %7 = tpu.iota {dimensions = array<i32: 1>} : vector<8x128xi32>
    %8 = vector.extract_strided_slice %5 {offsets = [0, 0], sizes = [8, 512], strides = [1, 1]} : vector<72x512xf32> to vector<8x512xf32>
    %cst_7 = arith.constant 0.000000e+00 : f32
    %9 = vector.broadcast %cst_7 : f32 to vector<8x128xf32>
    %10 = vector.extract_strided_slice %8 {offsets = [0, 0], sizes = [8, 256], strides = [1, 1]} : vector<8x512xf32> to vector<8x256xf32>
    %11 = arith.negf %10 : vector<8x256xf32>
    %12 = math.exp %11 : vector<8x256xf32>
    %cst_8 = arith.constant 1.000000e+00 : f32
    %13 = vector.broadcast %cst_8 : f32 to vector<8x256xf32>
    %14 = arith.addf %13, %12 : vector<8x256xf32>
    %15 = arith.divf %13, %14 : vector<8x256xf32>
    %16 = vector.extract_strided_slice %15 {offsets = [0, 0], sizes = [8, 128], strides = [1, 1]} : vector<8x256xf32> to vector<8x128xf32>
    %17 = vector.extract_strided_slice %15 {offsets = [0, 128], sizes = [8, 128], strides = [1, 1]} : vector<8x256xf32> to vector<8x128xf32>
    %18 = vector.extract_strided_slice %8 {offsets = [0, 256], sizes = [8, 128], strides = [1, 1]} : vector<8x512xf32> to vector<8x128xf32>
    %19 = vector.extract_strided_slice %8 {offsets = [0, 384], sizes = [8, 128], strides = [1, 1]} : vector<8x512xf32> to vector<8x128xf32>
    %20 = arith.mulf %16, %18 : vector<8x128xf32>
    %21 = arith.addf %19, %20 : vector<8x128xf32>
    %22 = math.tanh %21 : vector<8x128xf32>
    %23 = arith.subf %9, %22 : vector<8x128xf32>
    %24 = arith.mulf %17, %23 : vector<8x128xf32>
    %25 = arith.addf %22, %24 : vector<8x128xf32>
    %c64_i32 = arith.constant 64 : i32
    %26 = vector.broadcast %c64_i32 : i32 to vector<8x128xi32>
    %27 = arith.cmpi slt, %7, %26 : vector<8x128xi32>
    %cst_9 = arith.constant 0.000000e+00 : f32
    %28 = vector.broadcast %cst_9 : f32 to vector<8x128xf32>
    %29 = arith.select %27, %25, %28 : vector<8x128xi1>, vector<8x128xf32>
    %cst_10 = arith.constant dense<0.000000e+00> : vector<8x512xf32>
    %30 = tpu.matmul %29, %6, %cst_10 {dimension_numbers = #tpu.dot_dimension_numbers<[1], [0], [0], [1], [0, 0, 1, 1], [], []>} : vector<8x128xf32>, vector<128x512xf32>, vector<8x512xf32> -> vector<8x512xf32>
    %31 = vector.extract_strided_slice %5 {offsets = [8, 0], sizes = [8, 512], strides = [1, 1]} : vector<72x512xf32> to vector<8x512xf32>
    %32 = arith.addf %30, %31 : vector<8x512xf32>
    %33 = vector.extract_strided_slice %32 {offsets = [0, 0], sizes = [8, 256], strides = [1, 1]} : vector<8x512xf32> to vector<8x256xf32>
    %34 = arith.negf %33 : vector<8x256xf32>
    %35 = math.exp %34 : vector<8x256xf32>
    %cst_11 = arith.constant 1.000000e+00 : f32
    %36 = vector.broadcast %cst_11 : f32 to vector<8x256xf32>
    %37 = arith.addf %36, %35 : vector<8x256xf32>
    %38 = arith.divf %36, %37 : vector<8x256xf32>
    %39 = vector.extract_strided_slice %38 {offsets = [0, 0], sizes = [8, 128], strides = [1, 1]} : vector<8x256xf32> to vector<8x128xf32>
    %40 = vector.extract_strided_slice %38 {offsets = [0, 128], sizes = [8, 128], strides = [1, 1]} : vector<8x256xf32> to vector<8x128xf32>
    %41 = vector.extract_strided_slice %32 {offsets = [0, 256], sizes = [8, 128], strides = [1, 1]} : vector<8x512xf32> to vector<8x128xf32>
    %42 = vector.extract_strided_slice %32 {offsets = [0, 384], sizes = [8, 128], strides = [1, 1]} : vector<8x512xf32> to vector<8x128xf32>
    %43 = arith.mulf %39, %41 : vector<8x128xf32>
    %44 = arith.addf %42, %43 : vector<8x128xf32>
    %45 = math.tanh %44 : vector<8x128xf32>
    %46 = arith.subf %29, %45 : vector<8x128xf32>
    %47 = arith.mulf %40, %46 : vector<8x128xf32>
    %48 = arith.addf %45, %47 : vector<8x128xf32>
    %cst_12 = arith.constant dense<0.000000e+00> : vector<8x512xf32>
    %49 = tpu.matmul %48, %6, %cst_12 {dimension_numbers = #tpu.dot_dimension_numbers<[1], [0], [0], [1], [0, 0, 1, 1], [], []>} : vector<8x128xf32>, vector<128x512xf32>, vector<8x512xf32> -> vector<8x512xf32>
    %50 = vector.extract_strided_slice %5 {offsets = [16, 0], sizes = [8, 512], strides = [1, 1]} : vector<72x512xf32> to vector<8x512xf32>
    %51 = arith.addf %49, %50 : vector<8x512xf32>
    %52 = vector.extract_strided_slice %51 {offsets = [0, 0], sizes = [8, 256], strides = [1, 1]} : vector<8x512xf32> to vector<8x256xf32>
    %53 = arith.negf %52 : vector<8x256xf32>
    %54 = math.exp %53 : vector<8x256xf32>
    %cst_13 = arith.constant 1.000000e+00 : f32
    %55 = vector.broadcast %cst_13 : f32 to vector<8x256xf32>
    %56 = arith.addf %55, %54 : vector<8x256xf32>
    %57 = arith.divf %55, %56 : vector<8x256xf32>
    %58 = vector.extract_strided_slice %57 {offsets = [0, 0], sizes = [8, 128], strides = [1, 1]} : vector<8x256xf32> to vector<8x128xf32>
    %59 = vector.extract_strided_slice %57 {offsets = [0, 128], sizes = [8, 128], strides = [1, 1]} : vector<8x256xf32> to vector<8x128xf32>
    %60 = vector.extract_strided_slice %51 {offsets = [0, 256], sizes = [8, 128], strides = [1, 1]} : vector<8x512xf32> to vector<8x128xf32>
    %61 = vector.extract_strided_slice %51 {offsets = [0, 384], sizes = [8, 128], strides = [1, 1]} : vector<8x512xf32> to vector<8x128xf32>
    %62 = arith.mulf %58, %60 : vector<8x128xf32>
    %63 = arith.addf %61, %62 : vector<8x128xf32>
    %64 = math.tanh %63 : vector<8x128xf32>
    %65 = arith.subf %48, %64 : vector<8x128xf32>
    %66 = arith.mulf %59, %65 : vector<8x128xf32>
    %67 = arith.addf %64, %66 : vector<8x128xf32>
    %cst_14 = arith.constant dense<0.000000e+00> : vector<8x512xf32>
    %68 = tpu.matmul %67, %6, %cst_14 {dimension_numbers = #tpu.dot_dimension_numbers<[1], [0], [0], [1], [0, 0, 1, 1], [], []>} : vector<8x128xf32>, vector<128x512xf32>, vector<8x512xf32> -> vector<8x512xf32>
    %69 = vector.extract_strided_slice %5 {offsets = [24, 0], sizes = [8, 512], strides = [1, 1]} : vector<72x512xf32> to vector<8x512xf32>
    %70 = arith.addf %68, %69 : vector<8x512xf32>
    %71 = vector.extract_strided_slice %70 {offsets = [0, 0], sizes = [8, 256], strides = [1, 1]} : vector<8x512xf32> to vector<8x256xf32>
    %72 = arith.negf %71 : vector<8x256xf32>
    %73 = math.exp %72 : vector<8x256xf32>
    %cst_15 = arith.constant 1.000000e+00 : f32
    %74 = vector.broadcast %cst_15 : f32 to vector<8x256xf32>
    %75 = arith.addf %74, %73 : vector<8x256xf32>
    %76 = arith.divf %74, %75 : vector<8x256xf32>
    %77 = vector.extract_strided_slice %76 {offsets = [0, 0], sizes = [8, 128], strides = [1, 1]} : vector<8x256xf32> to vector<8x128xf32>
    %78 = vector.extract_strided_slice %76 {offsets = [0, 128], sizes = [8, 128], strides = [1, 1]} : vector<8x256xf32> to vector<8x128xf32>
    %79 = vector.extract_strided_slice %70 {offsets = [0, 256], sizes = [8, 128], strides = [1, 1]} : vector<8x512xf32> to vector<8x128xf32>
    %80 = vector.extract_strided_slice %70 {offsets = [0, 384], sizes = [8, 128], strides = [1, 1]} : vector<8x512xf32> to vector<8x128xf32>
    %81 = arith.mulf %77, %79 : vector<8x128xf32>
    %82 = arith.addf %80, %81 : vector<8x128xf32>
    %83 = math.tanh %82 : vector<8x128xf32>
    %84 = arith.subf %67, %83 : vector<8x128xf32>
    %85 = arith.mulf %78, %84 : vector<8x128xf32>
    %86 = arith.addf %83, %85 : vector<8x128xf32>
    %cst_16 = arith.constant dense<0.000000e+00> : vector<8x512xf32>
    %87 = tpu.matmul %86, %6, %cst_16 {dimension_numbers = #tpu.dot_dimension_numbers<[1], [0], [0], [1], [0, 0, 1, 1], [], []>} : vector<8x128xf32>, vector<128x512xf32>, vector<8x512xf32> -> vector<8x512xf32>
    %88 = vector.extract_strided_slice %5 {offsets = [32, 0], sizes = [8, 512], strides = [1, 1]} : vector<72x512xf32> to vector<8x512xf32>
    %89 = arith.addf %87, %88 : vector<8x512xf32>
    %90 = vector.extract_strided_slice %89 {offsets = [0, 0], sizes = [8, 256], strides = [1, 1]} : vector<8x512xf32> to vector<8x256xf32>
    %91 = arith.negf %90 : vector<8x256xf32>
    %92 = math.exp %91 : vector<8x256xf32>
    %cst_17 = arith.constant 1.000000e+00 : f32
    %93 = vector.broadcast %cst_17 : f32 to vector<8x256xf32>
    %94 = arith.addf %93, %92 : vector<8x256xf32>
    %95 = arith.divf %93, %94 : vector<8x256xf32>
    %96 = vector.extract_strided_slice %95 {offsets = [0, 0], sizes = [8, 128], strides = [1, 1]} : vector<8x256xf32> to vector<8x128xf32>
    %97 = vector.extract_strided_slice %95 {offsets = [0, 128], sizes = [8, 128], strides = [1, 1]} : vector<8x256xf32> to vector<8x128xf32>
    %98 = vector.extract_strided_slice %89 {offsets = [0, 256], sizes = [8, 128], strides = [1, 1]} : vector<8x512xf32> to vector<8x128xf32>
    %99 = vector.extract_strided_slice %89 {offsets = [0, 384], sizes = [8, 128], strides = [1, 1]} : vector<8x512xf32> to vector<8x128xf32>
    %100 = arith.mulf %96, %98 : vector<8x128xf32>
    %101 = arith.addf %99, %100 : vector<8x128xf32>
    %102 = math.tanh %101 : vector<8x128xf32>
    %103 = arith.subf %86, %102 : vector<8x128xf32>
    %104 = arith.mulf %97, %103 : vector<8x128xf32>
    %105 = arith.addf %102, %104 : vector<8x128xf32>
    %cst_18 = arith.constant dense<0.000000e+00> : vector<8x512xf32>
    %106 = tpu.matmul %105, %6, %cst_18 {dimension_numbers = #tpu.dot_dimension_numbers<[1], [0], [0], [1], [0, 0, 1, 1], [], []>} : vector<8x128xf32>, vector<128x512xf32>, vector<8x512xf32> -> vector<8x512xf32>
    %107 = vector.extract_strided_slice %5 {offsets = [40, 0], sizes = [8, 512], strides = [1, 1]} : vector<72x512xf32> to vector<8x512xf32>
    %108 = arith.addf %106, %107 : vector<8x512xf32>
    %109 = vector.extract_strided_slice %108 {offsets = [0, 0], sizes = [8, 256], strides = [1, 1]} : vector<8x512xf32> to vector<8x256xf32>
    %110 = arith.negf %109 : vector<8x256xf32>
    %111 = math.exp %110 : vector<8x256xf32>
    %cst_19 = arith.constant 1.000000e+00 : f32
    %112 = vector.broadcast %cst_19 : f32 to vector<8x256xf32>
    %113 = arith.addf %112, %111 : vector<8x256xf32>
    %114 = arith.divf %112, %113 : vector<8x256xf32>
    %115 = vector.extract_strided_slice %114 {offsets = [0, 0], sizes = [8, 128], strides = [1, 1]} : vector<8x256xf32> to vector<8x128xf32>
    %116 = vector.extract_strided_slice %114 {offsets = [0, 128], sizes = [8, 128], strides = [1, 1]} : vector<8x256xf32> to vector<8x128xf32>
    %117 = vector.extract_strided_slice %108 {offsets = [0, 256], sizes = [8, 128], strides = [1, 1]} : vector<8x512xf32> to vector<8x128xf32>
    %118 = vector.extract_strided_slice %108 {offsets = [0, 384], sizes = [8, 128], strides = [1, 1]} : vector<8x512xf32> to vector<8x128xf32>
    %119 = arith.mulf %115, %117 : vector<8x128xf32>
    %120 = arith.addf %118, %119 : vector<8x128xf32>
    %121 = math.tanh %120 : vector<8x128xf32>
    %122 = arith.subf %105, %121 : vector<8x128xf32>
    %123 = arith.mulf %116, %122 : vector<8x128xf32>
    %124 = arith.addf %121, %123 : vector<8x128xf32>
    %cst_20 = arith.constant dense<0.000000e+00> : vector<8x512xf32>
    %125 = tpu.matmul %124, %6, %cst_20 {dimension_numbers = #tpu.dot_dimension_numbers<[1], [0], [0], [1], [0, 0, 1, 1], [], []>} : vector<8x128xf32>, vector<128x512xf32>, vector<8x512xf32> -> vector<8x512xf32>
    %126 = vector.extract_strided_slice %5 {offsets = [48, 0], sizes = [8, 512], strides = [1, 1]} : vector<72x512xf32> to vector<8x512xf32>
    %127 = arith.addf %125, %126 : vector<8x512xf32>
    %128 = vector.extract_strided_slice %127 {offsets = [0, 0], sizes = [8, 256], strides = [1, 1]} : vector<8x512xf32> to vector<8x256xf32>
    %129 = arith.negf %128 : vector<8x256xf32>
    %130 = math.exp %129 : vector<8x256xf32>
    %cst_21 = arith.constant 1.000000e+00 : f32
    %131 = vector.broadcast %cst_21 : f32 to vector<8x256xf32>
    %132 = arith.addf %131, %130 : vector<8x256xf32>
    %133 = arith.divf %131, %132 : vector<8x256xf32>
    %134 = vector.extract_strided_slice %133 {offsets = [0, 0], sizes = [8, 128], strides = [1, 1]} : vector<8x256xf32> to vector<8x128xf32>
    %135 = vector.extract_strided_slice %133 {offsets = [0, 128], sizes = [8, 128], strides = [1, 1]} : vector<8x256xf32> to vector<8x128xf32>
    %136 = vector.extract_strided_slice %127 {offsets = [0, 256], sizes = [8, 128], strides = [1, 1]} : vector<8x512xf32> to vector<8x128xf32>
    %137 = vector.extract_strided_slice %127 {offsets = [0, 384], sizes = [8, 128], strides = [1, 1]} : vector<8x512xf32> to vector<8x128xf32>
    %138 = arith.mulf %134, %136 : vector<8x128xf32>
    %139 = arith.addf %137, %138 : vector<8x128xf32>
    %140 = math.tanh %139 : vector<8x128xf32>
    %141 = arith.subf %124, %140 : vector<8x128xf32>
    %142 = arith.mulf %135, %141 : vector<8x128xf32>
    %143 = arith.addf %140, %142 : vector<8x128xf32>
    %cst_22 = arith.constant dense<0.000000e+00> : vector<8x512xf32>
    %144 = tpu.matmul %143, %6, %cst_22 {dimension_numbers = #tpu.dot_dimension_numbers<[1], [0], [0], [1], [0, 0, 1, 1], [], []>} : vector<8x128xf32>, vector<128x512xf32>, vector<8x512xf32> -> vector<8x512xf32>
    %145 = vector.extract_strided_slice %5 {offsets = [56, 0], sizes = [8, 512], strides = [1, 1]} : vector<72x512xf32> to vector<8x512xf32>
    %146 = arith.addf %144, %145 : vector<8x512xf32>
    %147 = vector.extract_strided_slice %146 {offsets = [0, 0], sizes = [8, 256], strides = [1, 1]} : vector<8x512xf32> to vector<8x256xf32>
    %148 = arith.negf %147 : vector<8x256xf32>
    %149 = math.exp %148 : vector<8x256xf32>
    %cst_23 = arith.constant 1.000000e+00 : f32
    %150 = vector.broadcast %cst_23 : f32 to vector<8x256xf32>
    %151 = arith.addf %150, %149 : vector<8x256xf32>
    %152 = arith.divf %150, %151 : vector<8x256xf32>
    %153 = vector.extract_strided_slice %152 {offsets = [0, 0], sizes = [8, 128], strides = [1, 1]} : vector<8x256xf32> to vector<8x128xf32>
    %154 = vector.extract_strided_slice %152 {offsets = [0, 128], sizes = [8, 128], strides = [1, 1]} : vector<8x256xf32> to vector<8x128xf32>
    %155 = vector.extract_strided_slice %146 {offsets = [0, 256], sizes = [8, 128], strides = [1, 1]} : vector<8x512xf32> to vector<8x128xf32>
    %156 = vector.extract_strided_slice %146 {offsets = [0, 384], sizes = [8, 128], strides = [1, 1]} : vector<8x512xf32> to vector<8x128xf32>
    %157 = arith.mulf %153, %155 : vector<8x128xf32>
    %158 = arith.addf %156, %157 : vector<8x128xf32>
    %159 = math.tanh %158 : vector<8x128xf32>
    %160 = arith.subf %143, %159 : vector<8x128xf32>
    %161 = arith.mulf %154, %160 : vector<8x128xf32>
    %162 = arith.addf %159, %161 : vector<8x128xf32>
    %cst_24 = arith.constant dense<0.000000e+00> : vector<8x512xf32>
    %163 = tpu.matmul %162, %6, %cst_24 {dimension_numbers = #tpu.dot_dimension_numbers<[1], [0], [0], [1], [0, 0, 1, 1], [], []>} : vector<8x128xf32>, vector<128x512xf32>, vector<8x512xf32> -> vector<8x512xf32>
    %164 = vector.extract_strided_slice %5 {offsets = [64, 0], sizes = [8, 512], strides = [1, 1]} : vector<72x512xf32> to vector<8x512xf32>
    %165 = arith.addf %163, %164 : vector<8x512xf32>
    %166 = vector.extract_strided_slice %165 {offsets = [0, 0], sizes = [8, 256], strides = [1, 1]} : vector<8x512xf32> to vector<8x256xf32>
    %167 = arith.negf %166 : vector<8x256xf32>
    %168 = math.exp %167 : vector<8x256xf32>
    %cst_25 = arith.constant 1.000000e+00 : f32
    %169 = vector.broadcast %cst_25 : f32 to vector<8x256xf32>
    %170 = arith.addf %169, %168 : vector<8x256xf32>
    %171 = arith.divf %169, %170 : vector<8x256xf32>
    %172 = vector.extract_strided_slice %171 {offsets = [0, 0], sizes = [8, 128], strides = [1, 1]} : vector<8x256xf32> to vector<8x128xf32>
    %173 = vector.extract_strided_slice %171 {offsets = [0, 128], sizes = [8, 128], strides = [1, 1]} : vector<8x256xf32> to vector<8x128xf32>
    %174 = vector.extract_strided_slice %165 {offsets = [0, 256], sizes = [8, 128], strides = [1, 1]} : vector<8x512xf32> to vector<8x128xf32>
    %175 = vector.extract_strided_slice %165 {offsets = [0, 384], sizes = [8, 128], strides = [1, 1]} : vector<8x512xf32> to vector<8x128xf32>
    %176 = arith.mulf %172, %174 : vector<8x128xf32>
    %177 = arith.addf %175, %176 : vector<8x128xf32>
    %178 = math.tanh %177 : vector<8x128xf32>
    %179 = arith.subf %162, %178 : vector<8x128xf32>
    %180 = arith.mulf %173, %179 : vector<8x128xf32>
    %181 = arith.addf %178, %180 : vector<8x128xf32>
    %c0_26 = arith.constant 0 : index
    %c0_27 = arith.constant 0 : index
    %182 = vector.load %arg5[%c0_26, %c0_27] : memref<128x6xf32, #tpu.memory_space<vmem>>, vector<128x6xf32>
    %cst_28 = arith.constant dense<0.000000e+00> : vector<8x6xf32>
    %183 = tpu.matmul %181, %182, %cst_28 {dimension_numbers = #tpu.dot_dimension_numbers<[1], [0], [0], [1], [0, 0, 1, 1], [], []>} : vector<8x128xf32>, vector<128x6xf32>, vector<8x6xf32> -> vector<8x6xf32>
    %c0_29 = arith.constant 0 : index
    %c0_30 = arith.constant 0 : index
    %184 = vector.load %arg6[%c0_29, %c0_30] : memref<1x6xf32, #tpu.memory_space<vmem>>, vector<1x6xf32>
    %185 = vector.broadcast %184 : vector<1x6xf32> to vector<8x6xf32>
    %186 = arith.addf %183, %185 : vector<8x6xf32>
    %c0_31 = arith.constant 0 : index
    %c0_32 = arith.constant 0 : index
    %187 = vector.load %arg7[%c0_31, %c0_32] : memref<8x6xf32, #tpu.memory_space<vmem>>, vector<8x6xf32>
    tpu.vector_store %arg7[%c0_31, %c0_32], %186 {strides = array<i32>} : memref<8x6xf32, #tpu.memory_space<vmem>>, vector<8x6xf32>,
    return
  }
  func.func @transform_0(%arg0: i32) -> (i32, i32) {
    %c0_i32 = arith.constant 0 : i32
    %c0_i32_0 = arith.constant 0 : i32
    %c0_i32_1 = arith.constant 0 : i32
    return %c0_i32, %c0_i32_0 : i32, i32
  }
  func.func @transform_1(%arg0: i32) -> (i32, i32) {
    %c0_i32 = arith.constant 0 : i32
    %c0_i32_0 = arith.constant 0 : i32
    %c0_i32_1 = arith.constant 0 : i32
    return %c0_i32, %c0_i32_0 : i32, i32
  }
  func.func @transform_2(%arg0: i32) -> (i32, i32) {
    %c0_i32 = arith.constant 0 : i32
    %c0_i32_0 = arith.constant 0 : i32
    %c0_i32_1 = arith.constant 0 : i32
    return %c0_i32, %c0_i32_0 : i32, i32
  }
  func.func @transform_3(%arg0: i32) -> (i32, i32) {
    %c0_i32 = arith.constant 0 : i32
    %c0_i32_0 = arith.constant 0 : i32
    %c0_i32_1 = arith.constant 0 : i32
    return %c0_i32, %c0_i32_0 : i32, i32
  }
  func.func @transform_4(%arg0: i32) -> (i32, i32) {
    %c0_i32 = arith.constant 0 : i32
    %c0_i32_0 = arith.constant 0 : i32
    %c0_i32_1 = arith.constant 0 : i32
    return %c0_i32, %c0_i32_0 : i32, i32
  }
  func.func @transform_5(%arg0: i32) -> (i32, i32) {
    %c0_i32 = arith.constant 0 : i32
    %c0_i32_0 = arith.constant 0 : i32
    %c0_i32_1 = arith.constant 0 : i32
    return %c0_i32, %c0_i32_0 : i32, i32
  }
  func.func @transform_6(%arg0: i32) -> (i32, i32) {
    %c0_i32 = arith.constant 0 : i32
    %c0_i32_0 = arith.constant 0 : i32
    %c0_i32_1 = arith.constant 0 : i32
    return %c0_i32, %c0_i32_0 : i32, i32
  }
}

</mosaic_0001>

<llo_original>
// kernel: my_gru_forward.1
$region0: #{my_gru_forward.1}
  #allocation0 [shape = 'u32[]', space=smem, size = 0x4, offset = 0x4, fixed_abs, tag = 'smem constant byte address 0x4 - core index']
  #allocation1 [shape = 'u32[144,128]{1,0:T(1,128)}', space=vmem, size = 0x12000, scoped, tag = 'internal scratch']
  %s0 = inlined_call_operand.vmem [shape: f32[72,18], index: 0, kind: input, shape index: {}]
  %s1 = inlined_call_operand.vmem [shape: f32[18,512], index: 1, kind: input, shape index: {}]
  %s2 = inlined_call_operand.vmem [shape: f32[1,512], index: 2, kind: input, shape index: {}]
  %s3 = inlined_call_operand.hbm [shape: f32[128,512], index: 3, kind: input, shape index: {}]
  %s4 = inlined_call_operand.vmem [shape: f32[128,6], index: 4, kind: input, shape index: {}]
  %s5 = inlined_call_operand.vmem [shape: f32[1,6], index: 5, kind: input, shape index: {}]
  %s6 = inlined_call_operand.vmem [shape: f32[8,6], index: 6, kind: output, shape index: {}]
  %s7 = sld [smem:[#allocation0]]
  $region38: #{my_gru_forward.1} parent=0
    _
  %s9 = ssub.s32 1, %s7
  %s10 = scalar_select 0, %s9, %s7
  $region1: #{my_gru_forward.1} parent=0
    #allocation2 [shape = 'u8[262144]{0}', space=vmem, size = 0x40000, scoped, tag = 'input window, operand 3, single buffered']
    #allocation3 [shape = 's32[1]{0}', space=sflag, size = 0x4, scoped, tag = 'scoped memory for my_gru_forward.1']
    %11 = vsyncpa [#allocation3], 0
    // Predicated region
    $region2: #{my_gru_forward.1} parent=1 // pred_check
      _
    $region3: #{my_gru_forward.1} parent=1 // pred_check_branch
      %13 = sbr.rel (0) target = $region5
    $region4: #{my_gru_forward.1} parent=1 // pred_region
      _
    $region5: #{my_gru_forward.1} parent=1 // pred_fallthru
      _
    // Predicated region
    $region6: #{my_gru_forward.1} parent=1 // pred_check
      _
    $region7: #{my_gru_forward.1} parent=1 // pred_check_branch
      %15 = sbr.rel (0) target = $region9
    $region8: #{my_gru_forward.1} parent=1 // pred_region
      _
    $region9: #{my_gru_forward.1} parent=1 // pred_fallthru
      _
    // Predicated region
    $region10: #{my_gru_forward.1} parent=1 // pred_check
      _
    $region11: #{my_gru_forward.1} parent=1 // pred_check_branch
      %17 = sbr.rel (0) target = $region13
    $region12: #{my_gru_forward.1} parent=1 // pred_region
      _
    $region13: #{my_gru_forward.1} parent=1 // pred_fallthru
      _
    // Predicated region
    $region14: #{my_gru_forward.1} parent=1 // pred_check
      _
    $region15: #{my_gru_forward.1} parent=1 // pred_check_branch
      %19 = sbr.rel (0) target = $region17
    $region16: #{my_gru_forward.1} parent=1 // pred_region
      %s21 = ssub.s32 8192, 8192
      %22 = vsyncadd [#allocation3], %s21
      %s23 = sshll.u32 [#allocation2], 4
      %s24 = int_to_ptr.vmem [resolvable:$true] %s23
      %29 = dma.hbm_to_vmem [thread:$0]  %s3, 8192, %s24, [#allocation3], 512, 512, 32
    $region17: #{my_gru_forward.1} parent=1 // pred_fallthru
      _
    // Predicated region
    $region18: #{my_gru_forward.1} parent=1 // pred_check
      _
    $region19: #{my_gru_forward.1} parent=1 // pred_check_branch
      %31 = sbr.rel (0) target = $region21
    $region20: #{my_gru_forward.1} parent=1 // pred_region
      _
    $region21: #{my_gru_forward.1} parent=1 // pred_fallthru
      _
    // Predicated region
    $region22: #{my_gru_forward.1} parent=1 // pred_check
      _
    $region23: #{my_gru_forward.1} parent=1 // pred_check_branch
      %33 = sbr.rel (0) target = $region25
    $region24: #{my_gru_forward.1} parent=1 // pred_region
      _
    $region25: #{my_gru_forward.1} parent=1 // pred_fallthru
      _
    // Predicated region
    $region26: #{my_gru_forward.1} parent=1 // pred_check
      _
    $region27: #{my_gru_forward.1} parent=1 // pred_check_branch
      %35 = sbr.rel (0) target = $region29
    $region28: #{my_gru_forward.1} parent=1 // pred_region
      %36 = dma.done [#allocation3], 8192
    $region29: #{my_gru_forward.1} parent=1 // pred_fallthru
      _
    %v37 = vld [vmem:[%s0] sm:$0xff]
    %v38 = vld [vmem:[%s0 + $0x8] sm:$0xff]
    %v39 = vld [vmem:[%s0 + $0x10] sm:$0xff]
    %v40 = vld [vmem:[%s0 + $0x18] sm:$0xff]
    %v41 = vld [vmem:[%s0 + $0x20] sm:$0xff]
    %v42 = vld [vmem:[%s0 + $0x28] sm:$0xff]
    %v43 = vld [vmem:[%s0 + $0x30] sm:$0xff]
    %v44 = vld [vmem:[%s0 + $0x38] sm:$0xff]
    %v45 = vld [vmem:[%s0 + $0x40] sm:$0xff]
    %v46 = vld [vmem:[%s1] sm:$0xff]
    %v47 = vld [vmem:[%s1 + $0x8] sm:$0xff]
    %v48 = vld [vmem:[%s1 + $0x10] sm:$0xff]
    %v49 = vld [vmem:[%s1 + $0x18] sm:$0xff]
    %v50 = vld [vmem:[%s1 + $0x20] sm:$0xff]
    %v51 = vld [vmem:[%s1 + $0x28] sm:$0xff]
    %v52 = vld [vmem:[%s1 + $0x30] sm:$0xff]
    %v53 = vld [vmem:[%s1 + $0x38] sm:$0xff]
    %v54 = vld [vmem:[%s1 + $0x40] sm:$0x3]
    %v55 = vld [vmem:[%s1 + $0x48] sm:$0x3]
    %v56 = vld [vmem:[%s1 + $0x50] sm:$0x3]
    %v57 = vld [vmem:[%s1 + $0x58] sm:$0x3]
    %v58 = vld [vmem:[%s2] sm:$0xf]
    %v60 = vlaneseq
    %v61 = vshrl.u32 %v60, 7
    %v62 = vsub.s32 0, %v61
    %v63 = vrot.slane %v58, %v62
    %v64 = vlaneseq
    %v65 = vshrl.u32 %v64, 7
    %v66 = vsub.s32 1, %v65
    %v67 = vrot.slane %v58, %v66
    %v68 = vlaneseq
    %v69 = vshrl.u32 %v68, 7
    %v70 = vsub.s32 2, %v69
    %v71 = vrot.slane %v58, %v70
    %v72 = vlaneseq
    %v73 = vshrl.u32 %v72, 7
    %v74 = vsub.s32 3, %v73
    %v75 = vrot.slane %v58, %v74
    %vm80 = vcmask 146432
    %v82 = vsel %vm80, %v37, 0
    %v85 = vsel %vm80, %v38, 0
    %v88 = vsel %vm80, %v39, 0
    %v91 = vsel %vm80, %v40, 0
    %v94 = vsel %vm80, %v41, 0
    %v97 = vsel %vm80, %v42, 0
    %v100 = vsel %vm80, %v43, 0
    %v103 = vsel %vm80, %v44, 0
    %v106 = vsel %vm80, %v45, 0
    %vm108 = vcmask 1041408
    %v110 = vsel %vm108, %v54, 0
    %v113 = vsel %vm108, %v55, 0
    %v116 = vsel %vm108, %v56, 0
    %v119 = vsel %vm108, %v57, 0
    %121 = vmatprep.subr.mxu0 0.0
    %122 = vmatpush1.msra.mxu0 0.0
    %123 = vmatprep.subr.mxu0 0.0
    %124 = vmatpush1.msra.mxu0 0.0
    %125 = vmatprep.subr.mxu0 0.0
    %126 = vmatpush1.msra.mxu0 0.0
    %127 = vmatprep.subr.mxu0 0.0
    %128 = vmatpush1.msra.mxu0 0.0
    %129 = vmatprep.subr.mxu0 0.0
    %130 = vmatpush1.msra.mxu0 0.0
    %131 = vmatprep.subr.mxu0 0.0
    %132 = vmatpush1.msra.mxu0 0.0
    %133 = vmatprep.subr.mxu0 0.0
    %134 = vmatpush1.msra.mxu0 0.0
    %135 = vmatprep.subr.mxu0 0.0
    %136 = vmatpush1.msra.mxu0 0.0
    %137 = vmatprep.subr.mxu0 0.0
    %138 = vmatpush1.msra.mxu0 0.0
    %139 = vmatprep.subr.mxu0 0.0
    %140 = vmatpush1.msra.mxu0 0.0
    %141 = vmatprep.subr.mxu0 0.0
    %142 = vmatpush1.msra.mxu0 0.0
    %143 = vmatprep.subr.mxu0 0.0
    %144 = vmatpush1.msra.mxu0 0.0
    %145 = vmatprep.subr.mxu0 0.0
    %146 = vmatpush1.msra.mxu0 0.0
    %147 = vmatprep.subr.mxu0 %v113
    %148 = vmatpush1.msra.mxu0 %v110
    %149 = vmatprep.subr.mxu0 %v51
    %150 = vmatpush1.msra.mxu0 %v50
    %151 = vmatprep.subr.mxu0 %v47
    %152 = vmatpush1.msra.mxu0 %v46
    %153 = vmatprep.subr.mxu0 0.0
    %154 = vmatpush2.msra.mxu0 0.0
    %155 = vmatprep.subr.mxu0 0.0
    %156 = vmatpush2.msra.mxu0 0.0
    %157 = vmatprep.subr.mxu0 0.0
    %158 = vmatpush2.msra.mxu0 0.0
    %159 = vmatprep.subr.mxu0 0.0
    %160 = vmatpush2.msra.mxu0 0.0
    %161 = vmatprep.subr.mxu0 0.0
    %162 = vmatpush2.msra.mxu0 0.0
    %163 = vmatprep.subr.mxu0 0.0
    %164 = vmatpush2.msra.mxu0 0.0
    %165 = vmatprep.subr.mxu0 0.0
    %166 = vmatpush2.msra.mxu0 0.0
    %167 = vmatprep.subr.mxu0 0.0
    %168 = vmatpush2.msra.mxu0 0.0
    %169 = vmatprep.subr.mxu0 0.0
    %170 = vmatpush2.msra.mxu0 0.0
    %171 = vmatprep.subr.mxu0 0.0
    %172 = vmatpush2.msra.mxu0 0.0
    %173 = vmatprep.subr.mxu0 0.0
    %174 = vmatpush2.msra.mxu0 0.0
    %175 = vmatprep.subr.mxu0 0.0
    %176 = vmatpush2.msra.mxu0 0.0
    %177 = vmatprep.subr.mxu0 0.0
    %178 = vmatpush2.msra.mxu0 0.0
    %179 = vmatprep.subr.mxu0 0.0
    %180 = vmatpush2.msra.mxu0 0.0
    %181 = vmatprep.subr.mxu0 0.0
    %182 = vmatpush2.msra.mxu0 0.0
    %183 = vmatprep.subr.mxu0 0.0
    %184 = vmatpush2.msra.mxu0 0.0
    %185 = vmatprep.mubr.f32.mxu0 0.0
    %186 = vmatmul.mubr.f32.gmra.mxu0 %v82
    %v187 = vpop.f32.mrf.mxu0
    %v188 = vadd.f32 %v63, %v187
    %v189 = vpop.f32.mrf.mxu0
    %v190 = vadd.f32 %v67, %v189
    %191 = vmatprep.mubr.f32.mxu0 0.0
    %192 = vmatmul.mubr.f32.gmra.mxu0 %v85
    %v193 = vpop.f32.mrf.mxu0
    %v194 = vadd.f32 %v63, %v193
    %v195 = vpop.f32.mrf.mxu0
    %v196 = vadd.f32 %v67, %v195
    %197 = vmatprep.mubr.f32.mxu0 0.0
    %198 = vmatmul.mubr.f32.gmra.mxu0 %v88
    %v199 = vpop.f32.mrf.mxu0
    %v200 = vadd.f32 %v63, %v199
    %v201 = vpop.f32.mrf.mxu0
    %v202 = vadd.f32 %v67, %v201
    %203 = vmatprep.mubr.f32.mxu0 0.0
    %204 = vmatmul.mubr.f32.gmra.mxu0 %v91
    %v205 = vpop.f32.mrf.mxu0
    %v206 = vadd.f32 %v63, %v205
    %v207 = vpop.f32.mrf.mxu0
    %v208 = vadd.f32 %v67, %v207
    %209 = vmatprep.mubr.f32.mxu0 0.0
    %210 = vmatmul.mubr.f32.gmra.mxu0 %v94
    %v211 = vpop.f32.mrf.mxu0
    %v212 = vadd.f32 %v63, %v211
    %v213 = vpop.f32.mrf.mxu0
    %v214 = vadd.f32 %v67, %v213
    %215 = vmatprep.mubr.f32.mxu0 0.0
    %216 = vmatmul.mubr.f32.gmra.mxu0 %v97
    %v217 = vpop.f32.mrf.mxu0
    %v218 = vadd.f32 %v63, %v217
    %v219 = vpop.f32.mrf.mxu0
    %v220 = vadd.f32 %v67, %v219
    %221 = vmatprep.mubr.f32.mxu0 0.0
    %222 = vmatmul.mubr.f32.gmra.mxu0 %v100
    %v223 = vpop.f32.mrf.mxu0
    %v224 = vadd.f32 %v63, %v223
    %v225 = vpop.f32.mrf.mxu0
    %v226 = vadd.f32 %v67, %v225
    %227 = vmatprep.mubr.f32.mxu0 0.0
    %228 = vmatmul.mubr.f32.gmra.mxu0 %v103
    %v229 = vpop.f32.mrf.mxu0
    %v230 = vadd.f32 %v63, %v229
    %v231 = vpop.f32.mrf.mxu0
    %v232 = vadd.f32 %v67, %v231
    %233 = vmatprep.mubr.f32.mxu0 0.0
    %234 = vmatmul.mubr.f32.gmra.mxu0 %v106
    %v235 = vpop.f32.mrf.mxu0
    %v236 = vadd.f32 %v63, %v235
    %v237 = vpop.f32.mrf.mxu0
    %v238 = vadd.f32 %v67, %v237
    %239 = vdwg.mxu0
    %240 = vmatprep.subr.mxu0 0.0
    %241 = vmatpush1.msra.mxu0 0.0
    %242 = vmatprep.subr.mxu0 0.0
    %243 = vmatpush1.msra.mxu0 0.0
    %244 = vmatprep.subr.mxu0 0.0
    %245 = vmatpush1.msra.mxu0 0.0
    %246 = vmatprep.subr.mxu0 0.0
    %247 = vmatpush1.msra.mxu0 0.0
    %248 = vmatprep.subr.mxu0 0.0
    %249 = vmatpush1.msra.mxu0 0.0
    %250 = vmatprep.subr.mxu0 0.0
    %251 = vmatpush1.msra.mxu0 0.0
    %252 = vmatprep.subr.mxu0 0.0
    %253 = vmatpush1.msra.mxu0 0.0
    %254 = vmatprep.subr.mxu0 0.0
    %255 = vmatpush1.msra.mxu0 0.0
    %256 = vmatprep.subr.mxu0 0.0
    %257 = vmatpush1.msra.mxu0 0.0
    %258 = vmatprep.subr.mxu0 0.0
    %259 = vmatpush1.msra.mxu0 0.0
    %260 = vmatprep.subr.mxu0 0.0
    %261 = vmatpush1.msra.mxu0 0.0
    %262 = vmatprep.subr.mxu0 0.0
    %263 = vmatpush1.msra.mxu0 0.0
    %264 = vmatprep.subr.mxu0 0.0
    %265 = vmatpush1.msra.mxu0 0.0
    %266 = vmatprep.subr.mxu0 %v119
    %267 = vmatpush1.msra.mxu0 %v116
    %268 = vmatprep.subr.mxu0 %v53
    %269 = vmatpush1.msra.mxu0 %v52
    %270 = vmatprep.subr.mxu0 %v49
    %271 = vmatpush1.msra.mxu0 %v48
    %272 = vmatprep.subr.mxu0 0.0
    %273 = vmatpush2.msra.mxu0 0.0
    %274 = vmatprep.subr.mxu0 0.0
    %275 = vmatpush2.msra.mxu0 0.0
    %276 = vmatprep.subr.mxu0 0.0
    %277 = vmatpush2.msra.mxu0 0.0
    %278 = vmatprep.subr.mxu0 0.0
    %279 = vmatpush2.msra.mxu0 0.0
    %280 = vmatprep.subr.mxu0 0.0
    %281 = vmatpush2.msra.mxu0 0.0
    %282 = vmatprep.subr.mxu0 0.0
    %283 = vmatpush2.msra.mxu0 0.0
    %284 = vmatprep.subr.mxu0 0.0
    %285 = vmatpush2.msra.mxu0 0.0
    %286 = vmatprep.subr.mxu0 0.0
    %287 = vmatpush2.msra.mxu0 0.0
    %288 = vmatprep.subr.mxu0 0.0
    %289 = vmatpush2.msra.mxu0 0.0
    %290 = vmatprep.subr.mxu0 0.0
    %291 = vmatpush2.msra.mxu0 0.0
    %292 = vmatprep.subr.mxu0 0.0
    %293 = vmatpush2.msra.mxu0 0.0
    %294 = vmatprep.subr.mxu0 0.0
    %295 = vmatpush2.msra.mxu0 0.0
    %296 = vmatprep.subr.mxu0 0.0
    %297 = vmatpush2.msra.mxu0 0.0
    %298 = vmatprep.subr.mxu0 0.0
    %299 = vmatpush2.msra.mxu0 0.0
    %300 = vmatprep.subr.mxu0 0.0
    %301 = vmatpush2.msra.mxu0 0.0
    %302 = vmatprep.subr.mxu0 0.0
    %303 = vmatpush2.msra.mxu0 0.0
    %304 = vmatprep.mubr.f32.mxu0 0.0
    %305 = vmatmul.mubr.f32.gmra.mxu0 %v82
    %v306 = vpop.f32.mrf.mxu0
    %v307 = vadd.f32 %v71, %v306
    %v308 = vpop.f32.mrf.mxu0
    %v309 = vadd.f32 %v75, %v308
    %310 = vmatprep.mubr.f32.mxu0 0.0
    %311 = vmatmul.mubr.f32.gmra.mxu0 %v85
    %v312 = vpop.f32.mrf.mxu0
    %v313 = vadd.f32 %v71, %v312
    %v314 = vpop.f32.mrf.mxu0
    %v315 = vadd.f32 %v75, %v314
    %316 = vmatprep.mubr.f32.mxu0 0.0
    %317 = vmatmul.mubr.f32.gmra.mxu0 %v88
    %v318 = vpop.f32.mrf.mxu0
    %v319 = vadd.f32 %v71, %v318
    %v320 = vpop.f32.mrf.mxu0
    %v321 = vadd.f32 %v75, %v320
    %322 = vmatprep.mubr.f32.mxu0 0.0
    %323 = vmatmul.mubr.f32.gmra.mxu0 %v91
    %v324 = vpop.f32.mrf.mxu0
    %v325 = vadd.f32 %v71, %v324
    %v326 = vpop.f32.mrf.mxu0
    %v327 = vadd.f32 %v75, %v326
    %328 = vmatprep.mubr.f32.mxu0 0.0
    %329 = vmatmul.mubr.f32.gmra.mxu0 %v94
    %v330 = vpop.f32.mrf.mxu0
    %v331 = vadd.f32 %v71, %v330
    %v332 = vpop.f32.mrf.mxu0
    %v333 = vadd.f32 %v75, %v332
    %334 = vmatprep.mubr.f32.mxu0 0.0
    %335 = vmatmul.mubr.f32.gmra.mxu0 %v97
    %v336 = vpop.f32.mrf.mxu0
    %v337 = vadd.f32 %v71, %v336
    %v338 = vpop.f32.mrf.mxu0
    %v339 = vadd.f32 %v75, %v338
    %340 = vmatprep.mubr.f32.mxu0 0.0
    %341 = vmatmul.mubr.f32.gmra.mxu0 %v100
    %v342 = vpop.f32.mrf.mxu0
    %v343 = vadd.f32 %v71, %v342
    %v344 = vpop.f32.mrf.mxu0
    %v345 = vadd.f32 %v75, %v344
    %346 = vmatprep.mubr.f32.mxu0 0.0
    %347 = vmatmul.mubr.f32.gmra.mxu0 %v103
    %v348 = vpop.f32.mrf.mxu0
    %v349 = vadd.f32 %v71, %v348
    %v350 = vpop.f32.mrf.mxu0
    %v351 = vadd.f32 %v75, %v350
    %352 = vmatprep.mubr.f32.mxu0 0.0
    %353 = vmatmul.mubr.f32.gmra.mxu0 %v106
    %v354 = vpop.f32.mrf.mxu0
    %v355 = vadd.f32 %v71, %v354
    %v356 = vpop.f32.mrf.mxu0
    %v357 = vadd.f32 %v75, %v356
    %358 = vdwg.mxu0
    %v359 = vld [vmem:[#allocation2] sm:$0xff]
    %v360 = vld [vmem:[#allocation2 + $0x8] sm:$0xff]
    %v361 = vld [vmem:[#allocation2 + $0x10] sm:$0xff]
    %v362 = vld [vmem:[#allocation2 + $0x18] sm:$0xff]
    %v363 = vld [vmem:[#allocation2 + $0x20] sm:$0xff]
    %v364 = vld [vmem:[#allocation2 + $0x28] sm:$0xff]
    %v365 = vld [vmem:[#allocation2 + $0x30] sm:$0xff]
    %v366 = vld [vmem:[#allocation2 + $0x38] sm:$0xff]
    %v367 = vld [vmem:[#allocation2 + $0x40] sm:$0xff]
    %v368 = vld [vmem:[#allocation2 + $0x48] sm:$0xff]
    %v369 = vld [vmem:[#allocation2 + $0x50] sm:$0xff]
    %v370 = vld [vmem:[#allocation2 + $0x58] sm:$0xff]
    %v371 = vld [vmem:[#allocation2 + $0x60] sm:$0xff]
    %v372 = vld [vmem:[#allocation2 + $0x68] sm:$0xff]
    %v373 = vld [vmem:[#allocation2 + $0x70] sm:$0xff]
    %v374 = vld [vmem:[#allocation2 + $0x78] sm:$0xff]
    %v375 = vld [vmem:[#allocation2 + $0x80] sm:$0xff]
    %v376 = vld [vmem:[#allocation2 + $0x88] sm:$0xff]
    %v377 = vld [vmem:[#allocation2 + $0x90] sm:$0xff]
    %v378 = vld [vmem:[#allocation2 + $0x98] sm:$0xff]
    %v379 = vld [vmem:[#allocation2 + $0xa0] sm:$0xff]
    %v380 = vld [vmem:[#allocation2 + $0xa8] sm:$0xff]
    %v381 = vld [vmem:[#allocation2 + $0xb0] sm:$0xff]
    %v382 = vld [vmem:[#allocation2 + $0xb8] sm:$0xff]
    %v383 = vld [vmem:[#allocation2 + $0xc0] sm:$0xff]
    %v384 = vld [vmem:[#allocation2 + $0xc8] sm:$0xff]
    %v385 = vld [vmem:[#allocation2 + $0xd0] sm:$0xff]
    %v386 = vld [vmem:[#allocation2 + $0xd8] sm:$0xff]
    %v387 = vld [vmem:[#allocation2 + $0xe0] sm:$0xff]
    %v388 = vld [vmem:[#allocation2 + $0xe8] sm:$0xff]
    %v389 = vld [vmem:[#allocation2 + $0xf0] sm:$0xff]
    %v390 = vld [vmem:[#allocation2 + $0xf8] sm:$0xff]
    %v391 = vld [vmem:[#allocation2 + $0x100] sm:$0xff]
    %v392 = vld [vmem:[#allocation2 + $0x108] sm:$0xff]
    %v393 = vld [vmem:[#allocation2 + $0x110] sm:$0xff]
    %v394 = vld [vmem:[#allocation2 + $0x118] sm:$0xff]
    %v395 = vld [vmem:[#allocation2 + $0x120] sm:$0xff]
    %v396 = vld [vmem:[#allocation2 + $0x128] sm:$0xff]
    %v397 = vld [vmem:[#allocation2 + $0x130] sm:$0xff]
    %v398 = vld [vmem:[#allocation2 + $0x138] sm:$0xff]
    %v399 = vld [vmem:[#allocation2 + $0x140] sm:$0xff]
    %v400 = vld [vmem:[#allocation2 + $0x148] sm:$0xff]
    %v401 = vld [vmem:[#allocation2 + $0x150] sm:$0xff]
    %v402 = vld [vmem:[#allocation2 + $0x158] sm:$0xff]
    %v403 = vld [vmem:[#allocation2 + $0x160] sm:$0xff]
    %v404 = vld [vmem:[#allocation2 + $0x168] sm:$0xff]
    %v405 = vld [vmem:[#allocation2 + $0x170] sm:$0xff]
    %v406 = vld [vmem:[#allocation2 + $0x178] sm:$0xff]
    %v407 = vld [vmem:[#allocation2 + $0x180] sm:$0xff]
    %v408 = vld [vmem:[#allocation2 + $0x188] sm:$0xff]
    %v409 = vld [vmem:[#allocation2 + $0x190] sm:$0xff]
    %v410 = vld [vmem:[#allocation2 + $0x198] sm:$0xff]
    %v411 = vld [vmem:[#allocation2 + $0x1a0] sm:$0xff]
    %v412 = vld [vmem:[#allocation2 + $0x1a8] sm:$0xff]
    %v413 = vld [vmem:[#allocation2 + $0x1b0] sm:$0xff]
    %v414 = vld [vmem:[#allocation2 + $0x1b8] sm:$0xff]
    %v415 = vld [vmem:[#allocation2 + $0x1c0] sm:$0xff]
    %v416 = vld [vmem:[#allocation2 + $0x1c8] sm:$0xff]
    %v417 = vld [vmem:[#allocation2 + $0x1d0] sm:$0xff]
    %v418 = vld [vmem:[#allocation2 + $0x1d8] sm:$0xff]
    %v419 = vld [vmem:[#allocation2 + $0x1e0] sm:$0xff]
    %v420 = vld [vmem:[#allocation2 + $0x1e8] sm:$0xff]
    %v421 = vld [vmem:[#allocation2 + $0x1f0] sm:$0xff]
    %v422 = vld [vmem:[#allocation2 + $0x1f8] sm:$0xff]
    %v423 = vlaneseq
    %v424 = vand.u32 %v423, 127
    %v425 = vxor.u32 %v188, 2147483648
    %v426 = vxor.u32 %v190, 2147483648
    %v427 = vmul.f32 %v425, 1.442695
    %v428 = vpow.pop %v427
    %v429 = vmul.f32 %v426, 1.442695
    %v430 = vpow.pop %v429
    %v431 = vadd.f32 %v428, 1.0
    %v432 = vadd.f32 %v430, 1.0
    %v433 = vrcp.pop %v431
    %v434 = vmul.f32 1.0, %v433
    %v435 = vrcp.pop %v432
    %v436 = vmul.f32 1.0, %v435
    %v437 = vmul.f32 %v434, %v307
    %v438 = vadd.f32 %v309, %v437
    %v439 = vtanh.pop %v438
    %v440 = vsub.f32 0.0, %v439
    %v441 = vmul.f32 %v436, %v440
    %v442 = vadd.f32 %v439, %v441
    %vm443 = vcmp.lt.s32.totalorder %v424, 64
    %v444 = vsel %vm443, %v442, 0.0
    %445 = vmatprep.subr.mxu0 %v420
    %446 = vmatpush1.msra.mxu0 %v419
    %447 = vmatprep.subr.mxu0 %v416
    %448 = vmatpush1.msra.mxu0 %v415
    %449 = vmatprep.subr.mxu0 %v412
    %450 = vmatpush1.msra.mxu0 %v411
    %451 = vmatprep.subr.mxu0 %v408
    %452 = vmatpush1.msra.mxu0 %v407
    %453 = vmatprep.subr.mxu0 %v404
    %454 = vmatpush1.msra.mxu0 %v403
    %455 = vmatprep.subr.mxu0 %v400
    %456 = vmatpush1.msra.mxu0 %v399
    %457 = vmatprep.subr.mxu0 %v396
    %458 = vmatpush1.msra.mxu0 %v395
    %459 = vmatprep.subr.mxu0 %v392
    %460 = vmatpush1.msra.mxu0 %v391
    %461 = vmatprep.subr.mxu0 %v388
    %462 = vmatpush1.msra.mxu0 %v387
    %463 = vmatprep.subr.mxu0 %v384
    %464 = vmatpush1.msra.mxu0 %v383
    %465 = vmatprep.subr.mxu0 %v380
    %466 = vmatpush1.msra.mxu0 %v379
    %467 = vmatprep.subr.mxu0 %v376
    %468 = vmatpush1.msra.mxu0 %v375
    %469 = vmatprep.subr.mxu0 %v372
    %470 = vmatpush1.msra.mxu0 %v371
    %471 = vmatprep.subr.mxu0 %v368
    %472 = vmatpush1.msra.mxu0 %v367
    %473 = vmatprep.subr.mxu0 %v364
    %474 = vmatpush1.msra.mxu0 %v363
    %475 = vmatprep.subr.mxu0 %v360
    %476 = vmatpush1.msra.mxu0 %v359
    %477 = vmatprep.subr.mxu0 0.0
    %478 = vmatpush2.msra.mxu0 0.0
    %479 = vmatprep.subr.mxu0 0.0
    %480 = vmatpush2.msra.mxu0 0.0
    %481 = vmatprep.subr.mxu0 0.0
    %482 = vmatpush2.msra.mxu0 0.0
    %483 = vmatprep.subr.mxu0 0.0
    %484 = vmatpush2.msra.mxu0 0.0
    %485 = vmatprep.subr.mxu0 0.0
    %486 = vmatpush2.msra.mxu0 0.0
    %487 = vmatprep.subr.mxu0 0.0
    %488 = vmatpush2.msra.mxu0 0.0
    %489 = vmatprep.subr.mxu0 0.0
    %490 = vmatpush2.msra.mxu0 0.0
    %491 = vmatprep.subr.mxu0 0.0
    %492 = vmatpush2.msra.mxu0 0.0
    %493 = vmatprep.subr.mxu0 0.0
    %494 = vmatpush2.msra.mxu0 0.0
    %495 = vmatprep.subr.mxu0 0.0
    %496 = vmatpush2.msra.mxu0 0.0
    %497 = vmatprep.subr.mxu0 0.0
    %498 = vmatpush2.msra.mxu0 0.0
    %499 = vmatprep.subr.mxu0 0.0
    %500 = vmatpush2.msra.mxu0 0.0
    %501 = vmatprep.subr.mxu0 0.0
    %502 = vmatpush2.msra.mxu0 0.0
    %503 = vmatprep.subr.mxu0 0.0
    %504 = vmatpush2.msra.mxu0 0.0
    %505 = vmatprep.subr.mxu0 0.0
    %506 = vmatpush2.msra.mxu0 0.0
    %507 = vmatprep.subr.mxu0 0.0
    %508 = vmatpush2.msra.mxu0 0.0
    %509 = vmatprep.mubr.f32.mxu0 0.0
    %510 = vmatmul.mubr.f32.gmra.mxu0 %v444
    %v511 = vpop.f32.mrf.mxu0
    %v512 = vadd.f32 %v194, %v511
    %v513 = vpop.f32.mrf.mxu0
    %v514 = vadd.f32 %v196, %v513
    %515 = vdwg.mxu0
    %516 = vmatprep.subr.mxu0 %v422
    %517 = vmatpush1.msra.mxu0 %v421
    %518 = vmatprep.subr.mxu0 %v418
    %519 = vmatpush1.msra.mxu0 %v417
    %520 = vmatprep.subr.mxu0 %v414
    %521 = vmatpush1.msra.mxu0 %v413
    %522 = vmatprep.subr.mxu0 %v410
    %523 = vmatpush1.msra.mxu0 %v409
    %524 = vmatprep.subr.mxu0 %v406
    %525 = vmatpush1.msra.mxu0 %v405
    %526 = vmatprep.subr.mxu0 %v402
    %527 = vmatpush1.msra.mxu0 %v401
    %528 = vmatprep.subr.mxu0 %v398
    %529 = vmatpush1.msra.mxu0 %v397
    %530 = vmatprep.subr.mxu0 %v394
    %531 = vmatpush1.msra.mxu0 %v393
    %532 = vmatprep.subr.mxu0 %v390
    %533 = vmatpush1.msra.mxu0 %v389
    %534 = vmatprep.subr.mxu0 %v386
    %535 = vmatpush1.msra.mxu0 %v385
    %536 = vmatprep.subr.mxu0 %v382
    %537 = vmatpush1.msra.mxu0 %v381
    %538 = vmatprep.subr.mxu0 %v378
    %539 = vmatpush1.msra.mxu0 %v377
    %540 = vmatprep.subr.mxu0 %v374
    %541 = vmatpush1.msra.mxu0 %v373
    %542 = vmatprep.subr.mxu0 %v370
    %543 = vmatpush1.msra.mxu0 %v369
    %544 = vmatprep.subr.mxu0 %v366
    %545 = vmatpush1.msra.mxu0 %v365
    %546 = vmatprep.subr.mxu0 %v362
    %547 = vmatpush1.msra.mxu0 %v361
    %548 = vmatprep.subr.mxu0 0.0
    %549 = vmatpush2.msra.mxu0 0.0
    %550 = vmatprep.subr.mxu0 0.0
    %551 = vmatpush2.msra.mxu0 0.0
    %552 = vmatprep.subr.mxu0 0.0
    %553 = vmatpush2.msra.mxu0 0.0
    %554 = vmatprep.subr.mxu0 0.0
    %555 = vmatpush2.msra.mxu0 0.0
    %556 = vmatprep.subr.mxu0 0.0
    %557 = vmatpush2.msra.mxu0 0.0
    %558 = vmatprep.subr.mxu0 0.0
    %559 = vmatpush2.msra.mxu0 0.0
    %560 = vmatprep.subr.mxu0 0.0
    %561 = vmatpush2.msra.mxu0 0.0
    %562 = vmatprep.subr.mxu0 0.0
    %563 = vmatpush2.msra.mxu0 0.0
    %564 = vmatprep.subr.mxu0 0.0
    %565 = vmatpush2.msra.mxu0 0.0
    %566 = vmatprep.subr.mxu0 0.0
    %567 = vmatpush2.msra.mxu0 0.0
    %568 = vmatprep.subr.mxu0 0.0
    %569 = vmatpush2.msra.mxu0 0.0
    %570 = vmatprep.subr.mxu0 0.0
    %571 = vmatpush2.msra.mxu0 0.0
    %572 = vmatprep.subr.mxu0 0.0
    %573 = vmatpush2.msra.mxu0 0.0
    %574 = vmatprep.subr.mxu0 0.0
    %575 = vmatpush2.msra.mxu0 0.0
    %576 = vmatprep.subr.mxu0 0.0
    %577 = vmatpush2.msra.mxu0 0.0
    %578 = vmatprep.subr.mxu0 0.0
    %579 = vmatpush2.msra.mxu0 0.0
    %580 = vmatprep.mubr.f32.mxu0 0.0
    %581 = vmatmul.mubr.f32.gmra.mxu0 %v444
    %v582 = vpop.f32.mrf.mxu0
    %v583 = vadd.f32 %v313, %v582
    %v584 = vpop.f32.mrf.mxu0
    %v585 = vadd.f32 %v315, %v584
    %586 = vdwg.mxu0
    %v587 = vxor.u32 %v512, 2147483648
    %v588 = vxor.u32 %v514, 2147483648
    %v589 = vmul.f32 %v587, 1.442695
    %v590 = vpow.pop %v589
    %v591 = vmul.f32 %v588, 1.442695
    %v592 = vpow.pop %v591
    %v593 = vadd.f32 %v590, 1.0
    %v594 = vadd.f32 %v592, 1.0
    %v595 = vrcp.pop %v593
    %v596 = vmul.f32 1.0, %v595
    %v597 = vrcp.pop %v594
    %v598 = vmul.f32 1.0, %v597
    %v599 = vmul.f32 %v596, %v583
    %v600 = vadd.f32 %v585, %v599
    %v601 = vtanh.pop %v600
    %v602 = vsub.f32 %v444, %v601
    %v603 = vmul.f32 %v598, %v602
    %v604 = vadd.f32 %v601, %v603
    %605 = vmatprep.subr.mxu0 %v420
    %606 = vmatpush1.msra.mxu0 %v419
    %607 = vmatprep.subr.mxu0 %v416
    %608 = vmatpush1.msra.mxu0 %v415
    %609 = vmatprep.subr.mxu0 %v412
    %610 = vmatpush1.msra.mxu0 %v411
    %611 = vmatprep.subr.mxu0 %v408
    %612 = vmatpush1.msra.mxu0 %v407
    %613 = vmatprep.subr.mxu0 %v404
    %614 = vmatpush1.msra.mxu0 %v403
    %615 = vmatprep.subr.mxu0 %v400
    %616 = vmatpush1.msra.mxu0 %v399
    %617 = vmatprep.subr.mxu0 %v396
    %618 = vmatpush1.msra.mxu0 %v395
    %619 = vmatprep.subr.mxu0 %v392
    %620 = vmatpush1.msra.mxu0 %v391
    %621 = vmatprep.subr.mxu0 %v388
    %622 = vmatpush1.msra.mxu0 %v387
    %623 = vmatprep.subr.mxu0 %v384
    %624 = vmatpush1.msra.mxu0 %v383
    %625 = vmatprep.subr.mxu0 %v380
    %626 = vmatpush1.msra.mxu0 %v379
    %627 = vmatprep.subr.mxu0 %v376
    %628 = vmatpush1.msra.mxu0 %v375
    %629 = vmatprep.subr.mxu0 %v372
    %630 = vmatpush1.msra.mxu0 %v371
    %631 = vmatprep.subr.mxu0 %v368
    %632 = vmatpush1.msra.mxu0 %v367
    %633 = vmatprep.subr.mxu0 %v364
    %634 = vmatpush1.msra.mxu0 %v363
    %635 = vmatprep.subr.mxu0 %v360
    %636 = vmatpush1.msra.mxu0 %v359
    %637 = vmatprep.subr.mxu0 0.0
    %638 = vmatpush2.msra.mxu0 0.0
    %639 = vmatprep.subr.mxu0 0.0
    %640 = vmatpush2.msra.mxu0 0.0
    %641 = vmatprep.subr.mxu0 0.0
    %642 = vmatpush2.msra.mxu0 0.0
    %643 = vmatprep.subr.mxu0 0.0
    %644 = vmatpush2.msra.mxu0 0.0
    %645 = vmatprep.subr.mxu0 0.0
    %646 = vmatpush2.msra.mxu0 0.0
    %647 = vmatprep.subr.mxu0 0.0
    %648 = vmatpush2.msra.mxu0 0.0
    %649 = vmatprep.subr.mxu0 0.0
    %650 = vmatpush2.msra.mxu0 0.0
    %651 = vmatprep.subr.mxu0 0.0
    %652 = vmatpush2.msra.mxu0 0.0
    %653 = vmatprep.subr.mxu0 0.0
    %654 = vmatpush2.msra.mxu0 0.0
    %655 = vmatprep.subr.mxu0 0.0
    %656 = vmatpush2.msra.mxu0 0.0
    %657 = vmatprep.subr.mxu0 0.0
    %658 = vmatpush2.msra.mxu0 0.0
    %659 = vmatprep.subr.mxu0 0.0
    %660 = vmatpush2.msra.mxu0 0.0
    %661 = vmatprep.subr.mxu0 0.0
    %662 = vmatpush2.msra.mxu0 0.0
    %663 = vmatprep.subr.mxu0 0.0
    %664 = vmatpush2.msra.mxu0 0.0
    %665 = vmatprep.subr.mxu0 0.0
    %666 = vmatpush2.msra.mxu0 0.0
    %667 = vmatprep.subr.mxu0 0.0
    %668 = vmatpush2.msra.mxu0 0.0
    %669 = vmatprep.mubr.f32.mxu0 0.0
    %670 = vmatmul.mubr.f32.gmra.mxu0 %v604
    %v671 = vpop.f32.mrf.mxu0
    %v672 = vadd.f32 %v200, %v671
    %v673 = vpop.f32.mrf.mxu0
    %v674 = vadd.f32 %v202, %v673
    %675 = vdwg.mxu0
    %676 = vmatprep.subr.mxu0 %v422
    %677 = vmatpush1.msra.mxu0 %v421
    %678 = vmatprep.subr.mxu0 %v418
    %679 = vmatpush1.msra.mxu0 %v417
    %680 = vmatprep.subr.mxu0 %v414
    %681 = vmatpush1.msra.mxu0 %v413
    %682 = vmatprep.subr.mxu0 %v410
    %683 = vmatpush1.msra.mxu0 %v409
    %684 = vmatprep.subr.mxu0 %v406
    %685 = vmatpush1.msra.mxu0 %v405
    %686 = vmatprep.subr.mxu0 %v402
    %687 = vmatpush1.msra.mxu0 %v401
    %688 = vmatprep.subr.mxu0 %v398
    %689 = vmatpush1.msra.mxu0 %v397
    %690 = vmatprep.subr.mxu0 %v394
    %691 = vmatpush1.msra.mxu0 %v393
    %692 = vmatprep.subr.mxu0 %v390
    %693 = vmatpush1.msra.mxu0 %v389
    %694 = vmatprep.subr.mxu0 %v386
    %695 = vmatpush1.msra.mxu0 %v385
    %696 = vmatprep.subr.mxu0 %v382
    %697 = vmatpush1.msra.mxu0 %v381
    %698 = vmatprep.subr.mxu0 %v378
    %699 = vmatpush1.msra.mxu0 %v377
    %700 = vmatprep.subr.mxu0 %v374
    %701 = vmatpush1.msra.mxu0 %v373
    %702 = vmatprep.subr.mxu0 %v370
    %703 = vmatpush1.msra.mxu0 %v369
    %704 = vmatprep.subr.mxu0 %v366
    %705 = vmatpush1.msra.mxu0 %v365
    %706 = vmatprep.subr.mxu0 %v362
    %707 = vmatpush1.msra.mxu0 %v361
    %708 = vmatprep.subr.mxu0 0.0
    %709 = vmatpush2.msra.mxu0 0.0
    %710 = vmatprep.subr.mxu0 0.0
    %711 = vmatpush2.msra.mxu0 0.0
    %712 = vmatprep.subr.mxu0 0.0
    %713 = vmatpush2.msra.mxu0 0.0
    %714 = vmatprep.subr.mxu0 0.0
    %715 = vmatpush2.msra.mxu0 0.0
    %716 = vmatprep.subr.mxu0 0.0
    %717 = vmatpush2.msra.mxu0 0.0
    %718 = vmatprep.subr.mxu0 0.0
    %719 = vmatpush2.msra.mxu0 0.0
    %720 = vmatprep.subr.mxu0 0.0
    %721 = vmatpush2.msra.mxu0 0.0
    %722 = vmatprep.subr.mxu0 0.0
    %723 = vmatpush2.msra.mxu0 0.0
    %724 = vmatprep.subr.mxu0 0.0
    %725 = vmatpush2.msra.mxu0 0.0
    %726 = vmatprep.subr.mxu0 0.0
    %727 = vmatpush2.msra.mxu0 0.0
    %728 = vmatprep.subr.mxu0 0.0
    %729 = vmatpush2.msra.mxu0 0.0
    %730 = vmatprep.subr.mxu0 0.0
    %731 = vmatpush2.msra.mxu0 0.0
    %732 = vmatprep.subr.mxu0 0.0
    %733 = vmatpush2.msra.mxu0 0.0
    %734 = vmatprep.subr.mxu0 0.0
    %735 = vmatpush2.msra.mxu0 0.0
    %736 = vmatprep.subr.mxu0 0.0
    %737 = vmatpush2.msra.mxu0 0.0
    %738 = vmatprep.subr.mxu0 0.0
    %739 = vmatpush2.msra.mxu0 0.0
    %740 = vmatprep.mubr.f32.mxu0 0.0
    %741 = vmatmul.mubr.f32.gmra.mxu0 %v604
    %v742 = vpop.f32.mrf.mxu0
    %v743 = vadd.f32 %v319, %v742
    %v744 = vpop.f32.mrf.mxu0
    %v745 = vadd.f32 %v321, %v744
    %746 = vdwg.mxu0
    %v747 = vxor.u32 %v672, 2147483648
    %v748 = vxor.u32 %v674, 2147483648
    %v749 = vmul.f32 %v747, 1.442695
    %v750 = vpow.pop %v749
    %v751 = vmul.f32 %v748, 1.442695
    %v752 = vpow.pop %v751
    %v753 = vadd.f32 %v750, 1.0
    %v754 = vadd.f32 %v752, 1.0
    %v755 = vrcp.pop %v753
    %v756 = vmul.f32 1.0, %v755
    %v757 = vrcp.pop %v754
    %v758 = vmul.f32 1.0, %v757
    %v759 = vmul.f32 %v756, %v743
    %v760 = vadd.f32 %v745, %v759
    %v761 = vtanh.pop %v760
    %v762 = vsub.f32 %v604, %v761
    %v763 = vmul.f32 %v758, %v762
    %v764 = vadd.f32 %v761, %v763
    %765 = vmatprep.subr.mxu0 %v420
    %766 = vmatpush1.msra.mxu0 %v419
    %767 = vmatprep.subr.mxu0 %v416
    %768 = vmatpush1.msra.mxu0 %v415
    %769 = vmatprep.subr.mxu0 %v412
    %770 = vmatpush1.msra.mxu0 %v411
    %771 = vmatprep.subr.mxu0 %v408
    %772 = vmatpush1.msra.mxu0 %v407
    %773 = vmatprep.subr.mxu0 %v404
    %774 = vmatpush1.msra.mxu0 %v403
    %775 = vmatprep.subr.mxu0 %v400
    %776 = vmatpush1.msra.mxu0 %v399
    %777 = vmatprep.subr.mxu0 %v396
    %778 = vmatpush1.msra.mxu0 %v395
    %779 = vmatprep.subr.mxu0 %v392
    %780 = vmatpush1.msra.mxu0 %v391
    %781 = vmatprep.subr.mxu0 %v388
    %782 = vmatpush1.msra.mxu0 %v387
    %783 = vmatprep.subr.mxu0 %v384
    %784 = vmatpush1.msra.mxu0 %v383
    %785 = vmatprep.subr.mxu0 %v380
    %786 = vmatpush1.msra.mxu0 %v379
    %787 = vmatprep.subr.mxu0 %v376
    %788 = vmatpush1.msra.mxu0 %v375
    %789 = vmatprep.subr.mxu0 %v372
    %790 = vmatpush1.msra.mxu0 %v371
    %791 = vmatprep.subr.mxu0 %v368
    %792 = vmatpush1.msra.mxu0 %v367
    %793 = vmatprep.subr.mxu0 %v364
    %794 = vmatpush1.msra.mxu0 %v363
    %795 = vmatprep.subr.mxu0 %v360
    %796 = vmatpush1.msra.mxu0 %v359
    %797 = vmatprep.subr.mxu0 0.0
    %798 = vmatpush2.msra.mxu0 0.0
    %799 = vmatprep.subr.mxu0 0.0
    %800 = vmatpush2.msra.mxu0 0.0
    %801 = vmatprep.subr.mxu0 0.0
    %802 = vmatpush2.msra.mxu0 0.0
    %803 = vmatprep.subr.mxu0 0.0
    %804 = vmatpush2.msra.mxu0 0.0
    %805 = vmatprep.subr.mxu0 0.0
    %806 = vmatpush2.msra.mxu0 0.0
    %807 = vmatprep.subr.mxu0 0.0
    %808 = vmatpush2.msra.mxu0 0.0
    %809 = vmatprep.subr.mxu0 0.0
    %810 = vmatpush2.msra.mxu0 0.0
    %811 = vmatprep.subr.mxu0 0.0
    %812 = vmatpush2.msra.mxu0 0.0
    %813 = vmatprep.subr.mxu0 0.0
    %814 = vmatpush2.msra.mxu0 0.0
    %815 = vmatprep.subr.mxu0 0.0
    %816 = vmatpush2.msra.mxu0 0.0
    %817 = vmatprep.subr.mxu0 0.0
    %818 = vmatpush2.msra.mxu0 0.0
    %819 = vmatprep.subr.mxu0 0.0
    %820 = vmatpush2.msra.mxu0 0.0
    %821 = vmatprep.subr.mxu0 0.0
    %822 = vmatpush2.msra.mxu0 0.0
    %823 = vmatprep.subr.mxu0 0.0
    %824 = vmatpush2.msra.mxu0 0.0
    %825 = vmatprep.subr.mxu0 0.0
    %826 = vmatpush2.msra.mxu0 0.0
    %827 = vmatprep.subr.mxu0 0.0
    %828 = vmatpush2.msra.mxu0 0.0
    %829 = vmatprep.mubr.f32.mxu0 0.0
    %830 = vmatmul.mubr.f32.gmra.mxu0 %v764
    %v831 = vpop.f32.mrf.mxu0
    %v832 = vadd.f32 %v206, %v831
    %v833 = vpop.f32.mrf.mxu0
    %v834 = vadd.f32 %v208, %v833
    %835 = vdwg.mxu0
    %836 = vmatprep.subr.mxu0 %v422
    %837 = vmatpush1.msra.mxu0 %v421
    %838 = vmatprep.subr.mxu0 %v418
    %839 = vmatpush1.msra.mxu0 %v417
    %840 = vmatprep.subr.mxu0 %v414
    %841 = vmatpush1.msra.mxu0 %v413
    %842 = vmatprep.subr.mxu0 %v410
    %843 = vmatpush1.msra.mxu0 %v409
    %844 = vmatprep.subr.mxu0 %v406
    %845 = vmatpush1.msra.mxu0 %v405
    %846 = vmatprep.subr.mxu0 %v402
    %847 = vmatpush1.msra.mxu0 %v401
    %848 = vmatprep.subr.mxu0 %v398
    %849 = vmatpush1.msra.mxu0 %v397
    %850 = vmatprep.subr.mxu0 %v394
    %851 = vmatpush1.msra.mxu0 %v393
    %852 = vmatprep.subr.mxu0 %v390
    %853 = vmatpush1.msra.mxu0 %v389
    %854 = vmatprep.subr.mxu0 %v386
    %855 = vmatpush1.msra.mxu0 %v385
    %856 = vmatprep.subr.mxu0 %v382
    %857 = vmatpush1.msra.mxu0 %v381
    %858 = vmatprep.subr.mxu0 %v378
    %859 = vmatpush1.msra.mxu0 %v377
    %860 = vmatprep.subr.mxu0 %v374
    %861 = vmatpush1.msra.mxu0 %v373
    %862 = vmatprep.subr.mxu0 %v370
    %863 = vmatpush1.msra.mxu0 %v369
    %864 = vmatprep.subr.mxu0 %v366
    %865 = vmatpush1.msra.mxu0 %v365
    %866 = vmatprep.subr.mxu0 %v362
    %867 = vmatpush1.msra.mxu0 %v361
    %868 = vmatprep.subr.mxu0 0.0
    %869 = vmatpush2.msra.mxu0 0.0
    %870 = vmatprep.subr.mxu0 0.0
    %871 = vmatpush2.msra.mxu0 0.0
    %872 = vmatprep.subr.mxu0 0.0
    %873 = vmatpush2.msra.mxu0 0.0
    %874 = vmatprep.subr.mxu0 0.0
    %875 = vmatpush2.msra.mxu0 0.0
    %876 = vmatprep.subr.mxu0 0.0
    %877 = vmatpush2.msra.mxu0 0.0
    %878 = vmatprep.subr.mxu0 0.0
    %879 = vmatpush2.msra.mxu0 0.0
    %880 = vmatprep.subr.mxu0 0.0
    %881 = vmatpush2.msra.mxu0 0.0
    %882 = vmatprep.subr.mxu0 0.0
    %883 = vmatpush2.msra.mxu0 0.0
    %884 = vmatprep.subr.mxu0 0.0
    %885 = vmatpush2.msra.mxu0 0.0
    %886 = vmatprep.subr.mxu0 0.0
    %887 = vmatpush2.msra.mxu0 0.0
    %888 = vmatprep.subr.mxu0 0.0
    %889 = vmatpush2.msra.mxu0 0.0
    %890 = vmatprep.subr.mxu0 0.0
    %891 = vmatpush2.msra.mxu0 0.0
    %892 = vmatprep.subr.mxu0 0.0
    %893 = vmatpush2.msra.mxu0 0.0
    %894 = vmatprep.subr.mxu0 0.0
    %895 = vmatpush2.msra.mxu0 0.0
    %896 = vmatprep.subr.mxu0 0.0
    %897 = vmatpush2.msra.mxu0 0.0
    %898 = vmatprep.subr.mxu0 0.0
    %899 = vmatpush2.msra.mxu0 0.0
    %900 = vmatprep.mubr.f32.mxu0 0.0
    %901 = vmatmul.mubr.f32.gmra.mxu0 %v764
    %v902 = vpop.f32.mrf.mxu0
    %v903 = vadd.f32 %v325, %v902
    %v904 = vpop.f32.mrf.mxu0
    %v905 = vadd.f32 %v327, %v904
    %906 = vdwg.mxu0
    %v907 = vxor.u32 %v832, 2147483648
    %v908 = vxor.u32 %v834, 2147483648
    %v909 = vmul.f32 %v907, 1.442695
    %v910 = vpow.pop %v909
    %v911 = vmul.f32 %v908, 1.442695
    %v912 = vpow.pop %v911
    %v913 = vadd.f32 %v910, 1.0
    %v914 = vadd.f32 %v912, 1.0
    %v915 = vrcp.pop %v913
    %v916 = vmul.f32 1.0, %v915
    %v917 = vrcp.pop %v914
    %v918 = vmul.f32 1.0, %v917
    %v919 = vmul.f32 %v916, %v903
    %v920 = vadd.f32 %v905, %v919
    %v921 = vtanh.pop %v920
    %v922 = vsub.f32 %v764, %v921
    %v923 = vmul.f32 %v918, %v922
    %v924 = vadd.f32 %v921, %v923
    %925 = vmatprep.subr.mxu0 %v420
    %926 = vmatpush1.msra.mxu0 %v419
    %927 = vmatprep.subr.mxu0 %v416
    %928 = vmatpush1.msra.mxu0 %v415
    %929 = vmatprep.subr.mxu0 %v412
    %930 = vmatpush1.msra.mxu0 %v411
    %931 = vmatprep.subr.mxu0 %v408
    %932 = vmatpush1.msra.mxu0 %v407
    %933 = vmatprep.subr.mxu0 %v404
    %934 = vmatpush1.msra.mxu0 %v403
    %935 = vmatprep.subr.mxu0 %v400
    %936 = vmatpush1.msra.mxu0 %v399
    %937 = vmatprep.subr.mxu0 %v396
    %938 = vmatpush1.msra.mxu0 %v395
    %939 = vmatprep.subr.mxu0 %v392
    %940 = vmatpush1.msra.mxu0 %v391
    %941 = vmatprep.subr.mxu0 %v388
    %942 = vmatpush1.msra.mxu0 %v387
    %943 = vmatprep.subr.mxu0 %v384
    %944 = vmatpush1.msra.mxu0 %v383
    %945 = vmatprep.subr.mxu0 %v380
    %946 = vmatpush1.msra.mxu0 %v379
    %947 = vmatprep.subr.mxu0 %v376
    %948 = vmatpush1.msra.mxu0 %v375
    %949 = vmatprep.subr.mxu0 %v372
    %950 = vmatpush1.msra.mxu0 %v371
    %951 = vmatprep.subr.mxu0 %v368
    %952 = vmatpush1.msra.mxu0 %v367
    %953 = vmatprep.subr.mxu0 %v364
    %954 = vmatpush1.msra.mxu0 %v363
    %955 = vmatprep.subr.mxu0 %v360
    %956 = vmatpush1.msra.mxu0 %v359
    %957 = vmatprep.subr.mxu0 0.0
    %958 = vmatpush2.msra.mxu0 0.0
    %959 = vmatprep.subr.mxu0 0.0
    %960 = vmatpush2.msra.mxu0 0.0
    %961 = vmatprep.subr.mxu0 0.0
    %962 = vmatpush2.msra.mxu0 0.0
    %963 = vmatprep.subr.mxu0 0.0
    %964 = vmatpush2.msra.mxu0 0.0
    %965 = vmatprep.subr.mxu0 0.0
    %966 = vmatpush2.msra.mxu0 0.0
    %967 = vmatprep.subr.mxu0 0.0
    %968 = vmatpush2.msra.mxu0 0.0
    %969 = vmatprep.subr.mxu0 0.0
    %970 = vmatpush2.msra.mxu0 0.0
    %971 = vmatprep.subr.mxu0 0.0
    %972 = vmatpush2.msra.mxu0 0.0
    %973 = vmatprep.subr.mxu0 0.0
    %974 = vmatpush2.msra.mxu0 0.0
    %975 = vmatprep.subr.mxu0 0.0
    %976 = vmatpush2.msra.mxu0 0.0
    %977 = vmatprep.subr.mxu0 0.0
    %978 = vmatpush2.msra.mxu0 0.0
    %979 = vmatprep.subr.mxu0 0.0
    %980 = vmatpush2.msra.mxu0 0.0
    %981 = vmatprep.subr.mxu0 0.0
    %982 = vmatpush2.msra.mxu0 0.0
    %983 = vmatprep.subr.mxu0 0.0
    %984 = vmatpush2.msra.mxu0 0.0
    %985 = vmatprep.subr.mxu0 0.0
    %986 = vmatpush2.msra.mxu0 0.0
    %987 = vmatprep.subr.mxu0 0.0
    %988 = vmatpush2.msra.mxu0 0.0
    %989 = vmatprep.mubr.f32.mxu0 0.0
    %990 = vmatmul.mubr.f32.gmra.mxu0 %v924
    %v991 = vpop.f32.mrf.mxu0
    %v992 = vadd.f32 %v212, %v991
    %v993 = vpop.f32.mrf.mxu0
    %v994 = vadd.f32 %v214, %v993
    %995 = vdwg.mxu0
    %996 = vmatprep.subr.mxu0 %v422
    %997 = vmatpush1.msra.mxu0 %v421
    %998 = vmatprep.subr.mxu0 %v418
    %999 = vmatpush1.msra.mxu0 %v417
    %1000 = vmatprep.subr.mxu0 %v414
    %1001 = vmatpush1.msra.mxu0 %v413
    %1002 = vmatprep.subr.mxu0 %v410
    %1003 = vmatpush1.msra.mxu0 %v409
    %1004 = vmatprep.subr.mxu0 %v406
    %1005 = vmatpush1.msra.mxu0 %v405
    %1006 = vmatprep.subr.mxu0 %v402
    %1007 = vmatpush1.msra.mxu0 %v401
    %1008 = vmatprep.subr.mxu0 %v398
    %1009 = vmatpush1.msra.mxu0 %v397
    %1010 = vmatprep.subr.mxu0 %v394
    %1011 = vmatpush1.msra.mxu0 %v393
    %1012 = vmatprep.subr.mxu0 %v390
    %1013 = vmatpush1.msra.mxu0 %v389
    %1014 = vmatprep.subr.mxu0 %v386
    %1015 = vmatpush1.msra.mxu0 %v385
    %1016 = vmatprep.subr.mxu0 %v382
    %1017 = vmatpush1.msra.mxu0 %v381
    %1018 = vmatprep.subr.mxu0 %v378
    %1019 = vmatpush1.msra.mxu0 %v377
    %1020 = vmatprep.subr.mxu0 %v374
    %1021 = vmatpush1.msra.mxu0 %v373
    %1022 = vmatprep.subr.mxu0 %v370
    %1023 = vmatpush1.msra.mxu0 %v369
    %1024 = vmatprep.subr.mxu0 %v366
    %1025 = vmatpush1.msra.mxu0 %v365
    %1026 = vmatprep.subr.mxu0 %v362
    %1027 = vmatpush1.msra.mxu0 %v361
    %1028 = vmatprep.subr.mxu0 0.0
    %1029 = vmatpush2.msra.mxu0 0.0
    %1030 = vmatprep.subr.mxu0 0.0
    %1031 = vmatpush2.msra.mxu0 0.0
    %1032 = vmatprep.subr.mxu0 0.0
    %1033 = vmatpush2.msra.mxu0 0.0
    %1034 = vmatprep.subr.mxu0 0.0
    %1035 = vmatpush2.msra.mxu0 0.0
    %1036 = vmatprep.subr.mxu0 0.0
    %1037 = vmatpush2.msra.mxu0 0.0
    %1038 = vmatprep.subr.mxu0 0.0
    %1039 = vmatpush2.msra.mxu0 0.0
    %1040 = vmatprep.subr.mxu0 0.0
    %1041 = vmatpush2.msra.mxu0 0.0
    %1042 = vmatprep.subr.mxu0 0.0
    %1043 = vmatpush2.msra.mxu0 0.0
    %1044 = vmatprep.subr.mxu0 0.0
    %1045 = vmatpush2.msra.mxu0 0.0
    %1046 = vmatprep.subr.mxu0 0.0
    %1047 = vmatpush2.msra.mxu0 0.0
    %1048 = vmatprep.subr.mxu0 0.0
    %1049 = vmatpush2.msra.mxu0 0.0
    %1050 = vmatprep.subr.mxu0 0.0
    %1051 = vmatpush2.msra.mxu0 0.0
    %1052 = vmatprep.subr.mxu0 0.0
    %1053 = vmatpush2.msra.mxu0 0.0
    %1054 = vmatprep.subr.mxu0 0.0
    %1055 = vmatpush2.msra.mxu0 0.0
    %1056 = vmatprep.subr.mxu0 0.0
    %1057 = vmatpush2.msra.mxu0 0.0
    %1058 = vmatprep.subr.mxu0 0.0
    %1059 = vmatpush2.msra.mxu0 0.0
    %1060 = vmatprep.mubr.f32.mxu0 0.0
    %1061 = vmatmul.mubr.f32.gmra.mxu0 %v924
    %v1062 = vpop.f32.mrf.mxu0
    %v1063 = vadd.f32 %v331, %v1062
    %v1064 = vpop.f32.mrf.mxu0
    %v1065 = vadd.f32 %v333, %v1064
    %1066 = vdwg.mxu0
    %v1067 = vxor.u32 %v992, 2147483648
    %v1068 = vxor.u32 %v994, 2147483648
    %v1069 = vmul.f32 %v1067, 1.442695
    %v1070 = vpow.pop %v1069
    %v1071 = vmul.f32 %v1068, 1.442695
    %v1072 = vpow.pop %v1071
    %v1073 = vadd.f32 %v1070, 1.0
    %v1074 = vadd.f32 %v1072, 1.0
    %v1075 = vrcp.pop %v1073
    %v1076 = vmul.f32 1.0, %v1075
    %v1077 = vrcp.pop %v1074
    %v1078 = vmul.f32 1.0, %v1077
    %v1079 = vmul.f32 %v1076, %v1063
    %v1080 = vadd.f32 %v1065, %v1079
    %v1081 = vtanh.pop %v1080
    %v1082 = vsub.f32 %v924, %v1081
    %v1083 = vmul.f32 %v1078, %v1082
    %v1084 = vadd.f32 %v1081, %v1083
    %1085 = vmatprep.subr.mxu0 %v420
    %1086 = vmatpush1.msra.mxu0 %v419
    %1087 = vmatprep.subr.mxu0 %v416
    %1088 = vmatpush1.msra.mxu0 %v415
    %1089 = vmatprep.subr.mxu0 %v412
    %1090 = vmatpush1.msra.mxu0 %v411
    %1091 = vmatprep.subr.mxu0 %v408
    %1092 = vmatpush1.msra.mxu0 %v407
    %1093 = vmatprep.subr.mxu0 %v404
    %1094 = vmatpush1.msra.mxu0 %v403
    %1095 = vmatprep.subr.mxu0 %v400
    %1096 = vmatpush1.msra.mxu0 %v399
    %1097 = vmatprep.subr.mxu0 %v396
    %1098 = vmatpush1.msra.mxu0 %v395
    %1099 = vmatprep.subr.mxu0 %v392
    %1100 = vmatpush1.msra.mxu0 %v391
    %1101 = vmatprep.subr.mxu0 %v388
    %1102 = vmatpush1.msra.mxu0 %v387
    %1103 = vmatprep.subr.mxu0 %v384
    %1104 = vmatpush1.msra.mxu0 %v383
    %1105 = vmatprep.subr.mxu0 %v380
    %1106 = vmatpush1.msra.mxu0 %v379
    %1107 = vmatprep.subr.mxu0 %v376
    %1108 = vmatpush1.msra.mxu0 %v375
    %1109 = vmatprep.subr.mxu0 %v372
    %1110 = vmatpush1.msra.mxu0 %v371
    %1111 = vmatprep.subr.mxu0 %v368
    %1112 = vmatpush1.msra.mxu0 %v367
    %1113 = vmatprep.subr.mxu0 %v364
    %1114 = vmatpush1.msra.mxu0 %v363
    %1115 = vmatprep.subr.mxu0 %v360
    %1116 = vmatpush1.msra.mxu0 %v359
    %1117 = vmatprep.subr.mxu0 0.0
    %1118 = vmatpush2.msra.mxu0 0.0
    %1119 = vmatprep.subr.mxu0 0.0
    %1120 = vmatpush2.msra.mxu0 0.0
    %1121 = vmatprep.subr.mxu0 0.0
    %1122 = vmatpush2.msra.mxu0 0.0
    %1123 = vmatprep.subr.mxu0 0.0
    %1124 = vmatpush2.msra.mxu0 0.0
    %1125 = vmatprep.subr.mxu0 0.0
    %1126 = vmatpush2.msra.mxu0 0.0
    %1127 = vmatprep.subr.mxu0 0.0
    %1128 = vmatpush2.msra.mxu0 0.0
    %1129 = vmatprep.subr.mxu0 0.0
    %1130 = vmatpush2.msra.mxu0 0.0
    %1131 = vmatprep.subr.mxu0 0.0
    %1132 = vmatpush2.msra.mxu0 0.0
    %1133 = vmatprep.subr.mxu0 0.0
    %1134 = vmatpush2.msra.mxu0 0.0
    %1135 = vmatprep.subr.mxu0 0.0
    %1136 = vmatpush2.msra.mxu0 0.0
    %1137 = vmatprep.subr.mxu0 0.0
    %1138 = vmatpush2.msra.mxu0 0.0
    %1139 = vmatprep.subr.mxu0 0.0
    %1140 = vmatpush2.msra.mxu0 0.0
    %1141 = vmatprep.subr.mxu0 0.0
    %1142 = vmatpush2.msra.mxu0 0.0
    %1143 = vmatprep.subr.mxu0 0.0
    %1144 = vmatpush2.msra.mxu0 0.0
    %1145 = vmatprep.subr.mxu0 0.0
    %1146 = vmatpush2.msra.mxu0 0.0
    %1147 = vmatprep.subr.mxu0 0.0
    %1148 = vmatpush2.msra.mxu0 0.0
    %1149 = vmatprep.mubr.f32.mxu0 0.0
    %1150 = vmatmul.mubr.f32.gmra.mxu0 %v1084
    %v1151 = vpop.f32.mrf.mxu0
    %v1152 = vadd.f32 %v218, %v1151
    %v1153 = vpop.f32.mrf.mxu0
    %v1154 = vadd.f32 %v220, %v1153
    %1155 = vdwg.mxu0
    %1156 = vmatprep.subr.mxu0 %v422
    %1157 = vmatpush1.msra.mxu0 %v421
    %1158 = vmatprep.subr.mxu0 %v418
    %1159 = vmatpush1.msra.mxu0 %v417
    %1160 = vmatprep.subr.mxu0 %v414
    %1161 = vmatpush1.msra.mxu0 %v413
    %1162 = vmatprep.subr.mxu0 %v410
    %1163 = vmatpush1.msra.mxu0 %v409
    %1164 = vmatprep.subr.mxu0 %v406
    %1165 = vmatpush1.msra.mxu0 %v405
    %1166 = vmatprep.subr.mxu0 %v402
    %1167 = vmatpush1.msra.mxu0 %v401
    %1168 = vmatprep.subr.mxu0 %v398
    %1169 = vmatpush1.msra.mxu0 %v397
    %1170 = vmatprep.subr.mxu0 %v394
    %1171 = vmatpush1.msra.mxu0 %v393
    %1172 = vmatprep.subr.mxu0 %v390
    %1173 = vmatpush1.msra.mxu0 %v389
    %1174 = vmatprep.subr.mxu0 %v386
    %1175 = vmatpush1.msra.mxu0 %v385
    %1176 = vmatprep.subr.mxu0 %v382
    %1177 = vmatpush1.msra.mxu0 %v381
    %1178 = vmatprep.subr.mxu0 %v378
    %1179 = vmatpush1.msra.mxu0 %v377
    %1180 = vmatprep.subr.mxu0 %v374
    %1181 = vmatpush1.msra.mxu0 %v373
    %1182 = vmatprep.subr.mxu0 %v370
    %1183 = vmatpush1.msra.mxu0 %v369
    %1184 = vmatprep.subr.mxu0 %v366
    %1185 = vmatpush1.msra.mxu0 %v365
    %1186 = vmatprep.subr.mxu0 %v362
    %1187 = vmatpush1.msra.mxu0 %v361
    %1188 = vmatprep.subr.mxu0 0.0
    %1189 = vmatpush2.msra.mxu0 0.0
    %1190 = vmatprep.subr.mxu0 0.0
    %1191 = vmatpush2.msra.mxu0 0.0
    %1192 = vmatprep.subr.mxu0 0.0
    %1193 = vmatpush2.msra.mxu0 0.0
    %1194 = vmatprep.subr.mxu0 0.0
    %1195 = vmatpush2.msra.mxu0 0.0
    %1196 = vmatprep.subr.mxu0 0.0
    %1197 = vmatpush2.msra.mxu0 0.0
    %1198 = vmatprep.subr.mxu0 0.0
    %1199 = vmatpush2.msra.mxu0 0.0
    %1200 = vmatprep.subr.mxu0 0.0
    %1201 = vmatpush2.msra.mxu0 0.0
    %1202 = vmatprep.subr.mxu0 0.0
    %1203 = vmatpush2.msra.mxu0 0.0
    %1204 = vmatprep.subr.mxu0 0.0
    %1205 = vmatpush2.msra.mxu0 0.0
    %1206 = vmatprep.subr.mxu0 0.0
    %1207 = vmatpush2.msra.mxu0 0.0
    %1208 = vmatprep.subr.mxu0 0.0
    %1209 = vmatpush2.msra.mxu0 0.0
    %1210 = vmatprep.subr.mxu0 0.0
    %1211 = vmatpush2.msra.mxu0 0.0
    %1212 = vmatprep.subr.mxu0 0.0
    %1213 = vmatpush2.msra.mxu0 0.0
    %1214 = vmatprep.subr.mxu0 0.0
    %1215 = vmatpush2.msra.mxu0 0.0
    %1216 = vmatprep.subr.mxu0 0.0
    %1217 = vmatpush2.msra.mxu0 0.0
    %1218 = vmatprep.subr.mxu0 0.0
    %1219 = vmatpush2.msra.mxu0 0.0
    %1220 = vmatprep.mubr.f32.mxu0 0.0
    %1221 = vmatmul.mubr.f32.gmra.mxu0 %v1084
    %v1222 = vpop.f32.mrf.mxu0
    %v1223 = vadd.f32 %v337, %v1222
    %v1224 = vpop.f32.mrf.mxu0
    %v1225 = vadd.f32 %v339, %v1224
    %1226 = vdwg.mxu0
    %v1227 = vxor.u32 %v1152, 2147483648
    %v1228 = vxor.u32 %v1154, 2147483648
    %v1229 = vmul.f32 %v1227, 1.442695
    %v1230 = vpow.pop %v1229
    %v1231 = vmul.f32 %v1228, 1.442695
    %v1232 = vpow.pop %v1231
    %v1233 = vadd.f32 %v1230, 1.0
    %v1234 = vadd.f32 %v1232, 1.0
    %v1235 = vrcp.pop %v1233
    %v1236 = vmul.f32 1.0, %v1235
    %v1237 = vrcp.pop %v1234
    %v1238 = vmul.f32 1.0, %v1237
    %v1239 = vmul.f32 %v1236, %v1223
    %v1240 = vadd.f32 %v1225, %v1239
    %v1241 = vtanh.pop %v1240
    %v1242 = vsub.f32 %v1084, %v1241
    %v1243 = vmul.f32 %v1238, %v1242
    %v1244 = vadd.f32 %v1241, %v1243
    %1245 = vmatprep.subr.mxu0 %v420
    %1246 = vmatpush1.msra.mxu0 %v419
    %1247 = vmatprep.subr.mxu0 %v416
    %1248 = vmatpush1.msra.mxu0 %v415
    %1249 = vmatprep.subr.mxu0 %v412
    %1250 = vmatpush1.msra.mxu0 %v411
    %1251 = vmatprep.subr.mxu0 %v408
    %1252 = vmatpush1.msra.mxu0 %v407
    %1253 = vmatprep.subr.mxu0 %v404
    %1254 = vmatpush1.msra.mxu0 %v403
    %1255 = vmatprep.subr.mxu0 %v400
    %1256 = vmatpush1.msra.mxu0 %v399
    %1257 = vmatprep.subr.mxu0 %v396
    %1258 = vmatpush1.msra.mxu0 %v395
    %1259 = vmatprep.subr.mxu0 %v392
    %1260 = vmatpush1.msra.mxu0 %v391
    %1261 = vmatprep.subr.mxu0 %v388
    %1262 = vmatpush1.msra.mxu0 %v387
    %1263 = vmatprep.subr.mxu0 %v384
    %1264 = vmatpush1.msra.mxu0 %v383
    %1265 = vmatprep.subr.mxu0 %v380
    %1266 = vmatpush1.msra.mxu0 %v379
    %1267 = vmatprep.subr.mxu0 %v376
    %1268 = vmatpush1.msra.mxu0 %v375
    %1269 = vmatprep.subr.mxu0 %v372
    %1270 = vmatpush1.msra.mxu0 %v371
    %1271 = vmatprep.subr.mxu0 %v368
    %1272 = vmatpush1.msra.mxu0 %v367
    %1273 = vmatprep.subr.mxu0 %v364
    %1274 = vmatpush1.msra.mxu0 %v363
    %1275 = vmatprep.subr.mxu0 %v360
    %1276 = vmatpush1.msra.mxu0 %v359
    %1277 = vmatprep.subr.mxu0 0.0
    %1278 = vmatpush2.msra.mxu0 0.0
    %1279 = vmatprep.subr.mxu0 0.0
    %1280 = vmatpush2.msra.mxu0 0.0
    %1281 = vmatprep.subr.mxu0 0.0
    %1282 = vmatpush2.msra.mxu0 0.0
    %1283 = vmatprep.subr.mxu0 0.0
    %1284 = vmatpush2.msra.mxu0 0.0
    %1285 = vmatprep.subr.mxu0 0.0
    %1286 = vmatpush2.msra.mxu0 0.0
    %1287 = vmatprep.subr.mxu0 0.0
    %1288 = vmatpush2.msra.mxu0 0.0
    %1289 = vmatprep.subr.mxu0 0.0
    %1290 = vmatpush2.msra.mxu0 0.0
    %1291 = vmatprep.subr.mxu0 0.0
    %1292 = vmatpush2.msra.mxu0 0.0
    %1293 = vmatprep.subr.mxu0 0.0
    %1294 = vmatpush2.msra.mxu0 0.0
    %1295 = vmatprep.subr.mxu0 0.0
    %1296 = vmatpush2.msra.mxu0 0.0
    %1297 = vmatprep.subr.mxu0 0.0
    %1298 = vmatpush2.msra.mxu0 0.0
    %1299 = vmatprep.subr.mxu0 0.0
    %1300 = vmatpush2.msra.mxu0 0.0
    %1301 = vmatprep.subr.mxu0 0.0
    %1302 = vmatpush2.msra.mxu0 0.0
    %1303 = vmatprep.subr.mxu0 0.0
    %1304 = vmatpush2.msra.mxu0 0.0
    %1305 = vmatprep.subr.mxu0 0.0
    %1306 = vmatpush2.msra.mxu0 0.0
    %1307 = vmatprep.subr.mxu0 0.0
    %1308 = vmatpush2.msra.mxu0 0.0
    %1309 = vmatprep.mubr.f32.mxu0 0.0
    %1310 = vmatmul.mubr.f32.gmra.mxu0 %v1244
    %v1311 = vpop.f32.mrf.mxu0
    %v1312 = vadd.f32 %v224, %v1311
    %v1313 = vpop.f32.mrf.mxu0
    %v1314 = vadd.f32 %v226, %v1313
    %1315 = vdwg.mxu0
    %1316 = vmatprep.subr.mxu0 %v422
    %1317 = vmatpush1.msra.mxu0 %v421
    %1318 = vmatprep.subr.mxu0 %v418
    %1319 = vmatpush1.msra.mxu0 %v417
    %1320 = vmatprep.subr.mxu0 %v414
    %1321 = vmatpush1.msra.mxu0 %v413
    %1322 = vmatprep.subr.mxu0 %v410
    %1323 = vmatpush1.msra.mxu0 %v409
    %1324 = vmatprep.subr.mxu0 %v406
    %1325 = vmatpush1.msra.mxu0 %v405
    %1326 = vmatprep.subr.mxu0 %v402
    %1327 = vmatpush1.msra.mxu0 %v401
    %1328 = vmatprep.subr.mxu0 %v398
    %1329 = vmatpush1.msra.mxu0 %v397
    %1330 = vmatprep.subr.mxu0 %v394
    %1331 = vmatpush1.msra.mxu0 %v393
    %1332 = vmatprep.subr.mxu0 %v390
    %1333 = vmatpush1.msra.mxu0 %v389
    %1334 = vmatprep.subr.mxu0 %v386
    %1335 = vmatpush1.msra.mxu0 %v385
    %1336 = vmatprep.subr.mxu0 %v382
    %1337 = vmatpush1.msra.mxu0 %v381
    %1338 = vmatprep.subr.mxu0 %v378
    %1339 = vmatpush1.msra.mxu0 %v377
    %1340 = vmatprep.subr.mxu0 %v374
    %1341 = vmatpush1.msra.mxu0 %v373
    %1342 = vmatprep.subr.mxu0 %v370
    %1343 = vmatpush1.msra.mxu0 %v369
    %1344 = vmatprep.subr.mxu0 %v366
    %1345 = vmatpush1.msra.mxu0 %v365
    %1346 = vmatprep.subr.mxu0 %v362
    %1347 = vmatpush1.msra.mxu0 %v361
    %1348 = vmatprep.subr.mxu0 0.0
    %1349 = vmatpush2.msra.mxu0 0.0
    %1350 = vmatprep.subr.mxu0 0.0
    %1351 = vmatpush2.msra.mxu0 0.0
    %1352 = vmatprep.subr.mxu0 0.0
    %1353 = vmatpush2.msra.mxu0 0.0
    %1354 = vmatprep.subr.mxu0 0.0
    %1355 = vmatpush2.msra.mxu0 0.0
    %1356 = vmatprep.subr.mxu0 0.0
    %1357 = vmatpush2.msra.mxu0 0.0
    %1358 = vmatprep.subr.mxu0 0.0
    %1359 = vmatpush2.msra.mxu0 0.0
    %1360 = vmatprep.subr.mxu0 0.0
    %1361 = vmatpush2.msra.mxu0 0.0
    %1362 = vmatprep.subr.mxu0 0.0
    %1363 = vmatpush2.msra.mxu0 0.0
    %1364 = vmatprep.subr.mxu0 0.0
    %1365 = vmatpush2.msra.mxu0 0.0
    %1366 = vmatprep.subr.mxu0 0.0
    %1367 = vmatpush2.msra.mxu0 0.0
    %1368 = vmatprep.subr.mxu0 0.0
    %1369 = vmatpush2.msra.mxu0 0.0
    %1370 = vmatprep.subr.mxu0 0.0
    %1371 = vmatpush2.msra.mxu0 0.0
    %1372 = vmatprep.subr.mxu0 0.0
    %1373 = vmatpush2.msra.mxu0 0.0
    %1374 = vmatprep.subr.mxu0 0.0
    %1375 = vmatpush2.msra.mxu0 0.0
    %1376 = vmatprep.subr.mxu0 0.0
    %1377 = vmatpush2.msra.mxu0 0.0
    %1378 = vmatprep.subr.mxu0 0.0
    %1379 = vmatpush2.msra.mxu0 0.0
    %1380 = vmatprep.mubr.f32.mxu0 0.0
    %1381 = vmatmul.mubr.f32.gmra.mxu0 %v1244
    %v1382 = vpop.f32.mrf.mxu0
    %v1383 = vadd.f32 %v343, %v1382
    %v1384 = vpop.f32.mrf.mxu0
    %v1385 = vadd.f32 %v345, %v1384
    %1386 = vdwg.mxu0
    %v1387 = vxor.u32 %v1312, 2147483648
    %v1388 = vxor.u32 %v1314, 2147483648
    %v1389 = vmul.f32 %v1387, 1.442695
    %v1390 = vpow.pop %v1389
    %v1391 = vmul.f32 %v1388, 1.442695
    %v1392 = vpow.pop %v1391
    %v1393 = vadd.f32 %v1390, 1.0
    %v1394 = vadd.f32 %v1392, 1.0
    %v1395 = vrcp.pop %v1393
    %v1396 = vmul.f32 1.0, %v1395
    %v1397 = vrcp.pop %v1394
    %v1398 = vmul.f32 1.0, %v1397
    %v1399 = vmul.f32 %v1396, %v1383
    %v1400 = vadd.f32 %v1385, %v1399
    %v1401 = vtanh.pop %v1400
    %v1402 = vsub.f32 %v1244, %v1401
    %v1403 = vmul.f32 %v1398, %v1402
    %v1404 = vadd.f32 %v1401, %v1403
    %1405 = vmatprep.subr.mxu0 %v420
    %1406 = vmatpush1.msra.mxu0 %v419
    %1407 = vmatprep.subr.mxu0 %v416
    %1408 = vmatpush1.msra.mxu0 %v415
    %1409 = vmatprep.subr.mxu0 %v412
    %1410 = vmatpush1.msra.mxu0 %v411
    %1411 = vmatprep.subr.mxu0 %v408
    %1412 = vmatpush1.msra.mxu0 %v407
    %1413 = vmatprep.subr.mxu0 %v404
    %1414 = vmatpush1.msra.mxu0 %v403
    %1415 = vmatprep.subr.mxu0 %v400
    %1416 = vmatpush1.msra.mxu0 %v399
    %1417 = vmatprep.subr.mxu0 %v396
    %1418 = vmatpush1.msra.mxu0 %v395
    %1419 = vmatprep.subr.mxu0 %v392
    %1420 = vmatpush1.msra.mxu0 %v391
    %1421 = vmatprep.subr.mxu0 %v388
    %1422 = vmatpush1.msra.mxu0 %v387
    %1423 = vmatprep.subr.mxu0 %v384
    %1424 = vmatpush1.msra.mxu0 %v383
    %1425 = vmatprep.subr.mxu0 %v380
    %1426 = vmatpush1.msra.mxu0 %v379
    %1427 = vmatprep.subr.mxu0 %v376
    %1428 = vmatpush1.msra.mxu0 %v375
    %1429 = vmatprep.subr.mxu0 %v372
    %1430 = vmatpush1.msra.mxu0 %v371
    %1431 = vmatprep.subr.mxu0 %v368
    %1432 = vmatpush1.msra.mxu0 %v367
    %1433 = vmatprep.subr.mxu0 %v364
    %1434 = vmatpush1.msra.mxu0 %v363
    %1435 = vmatprep.subr.mxu0 %v360
    %1436 = vmatpush1.msra.mxu0 %v359
    %1437 = vmatprep.subr.mxu0 0.0
    %1438 = vmatpush2.msra.mxu0 0.0
    %1439 = vmatprep.subr.mxu0 0.0
    %1440 = vmatpush2.msra.mxu0 0.0
    %1441 = vmatprep.subr.mxu0 0.0
    %1442 = vmatpush2.msra.mxu0 0.0
    %1443 = vmatprep.subr.mxu0 0.0
    %1444 = vmatpush2.msra.mxu0 0.0
    %1445 = vmatprep.subr.mxu0 0.0
    %1446 = vmatpush2.msra.mxu0 0.0
    %1447 = vmatprep.subr.mxu0 0.0
    %1448 = vmatpush2.msra.mxu0 0.0
    %1449 = vmatprep.subr.mxu0 0.0
    %1450 = vmatpush2.msra.mxu0 0.0
    %1451 = vmatprep.subr.mxu0 0.0
    %1452 = vmatpush2.msra.mxu0 0.0
    %1453 = vmatprep.subr.mxu0 0.0
    %1454 = vmatpush2.msra.mxu0 0.0
    %1455 = vmatprep.subr.mxu0 0.0
    %1456 = vmatpush2.msra.mxu0 0.0
    %1457 = vmatprep.subr.mxu0 0.0
    %1458 = vmatpush2.msra.mxu0 0.0
    %1459 = vmatprep.subr.mxu0 0.0
    %1460 = vmatpush2.msra.mxu0 0.0
    %1461 = vmatprep.subr.mxu0 0.0
    %1462 = vmatpush2.msra.mxu0 0.0
    %1463 = vmatprep.subr.mxu0 0.0
    %1464 = vmatpush2.msra.mxu0 0.0
    %1465 = vmatprep.subr.mxu0 0.0
    %1466 = vmatpush2.msra.mxu0 0.0
    %1467 = vmatprep.subr.mxu0 0.0
    %1468 = vmatpush2.msra.mxu0 0.0
    %1469 = vmatprep.mubr.f32.mxu0 0.0
    %1470 = vmatmul.mubr.f32.gmra.mxu0 %v1404
    %v1471 = vpop.f32.mrf.mxu0
    %v1472 = vadd.f32 %v230, %v1471
    %v1473 = vpop.f32.mrf.mxu0
    %v1474 = vadd.f32 %v232, %v1473
    %1475 = vdwg.mxu0
    %1476 = vmatprep.subr.mxu0 %v422
    %1477 = vmatpush1.msra.mxu0 %v421
    %1478 = vmatprep.subr.mxu0 %v418
    %1479 = vmatpush1.msra.mxu0 %v417
    %1480 = vmatprep.subr.mxu0 %v414
    %1481 = vmatpush1.msra.mxu0 %v413
    %1482 = vmatprep.subr.mxu0 %v410
    %1483 = vmatpush1.msra.mxu0 %v409
    %1484 = vmatprep.subr.mxu0 %v406
    %1485 = vmatpush1.msra.mxu0 %v405
    %1486 = vmatprep.subr.mxu0 %v402
    %1487 = vmatpush1.msra.mxu0 %v401
    %1488 = vmatprep.subr.mxu0 %v398
    %1489 = vmatpush1.msra.mxu0 %v397
    %1490 = vmatprep.subr.mxu0 %v394
    %1491 = vmatpush1.msra.mxu0 %v393
    %1492 = vmatprep.subr.mxu0 %v390
    %1493 = vmatpush1.msra.mxu0 %v389
    %1494 = vmatprep.subr.mxu0 %v386
    %1495 = vmatpush1.msra.mxu0 %v385
    %1496 = vmatprep.subr.mxu0 %v382
    %1497 = vmatpush1.msra.mxu0 %v381
    %1498 = vmatprep.subr.mxu0 %v378
    %1499 = vmatpush1.msra.mxu0 %v377
    %1500 = vmatprep.subr.mxu0 %v374
    %1501 = vmatpush1.msra.mxu0 %v373
    %1502 = vmatprep.subr.mxu0 %v370
    %1503 = vmatpush1.msra.mxu0 %v369
    %1504 = vmatprep.subr.mxu0 %v366
    %1505 = vmatpush1.msra.mxu0 %v365
    %1506 = vmatprep.subr.mxu0 %v362
    %1507 = vmatpush1.msra.mxu0 %v361
    %1508 = vmatprep.subr.mxu0 0.0
    %1509 = vmatpush2.msra.mxu0 0.0
    %1510 = vmatprep.subr.mxu0 0.0
    %1511 = vmatpush2.msra.mxu0 0.0
    %1512 = vmatprep.subr.mxu0 0.0
    %1513 = vmatpush2.msra.mxu0 0.0
    %1514 = vmatprep.subr.mxu0 0.0
    %1515 = vmatpush2.msra.mxu0 0.0
    %1516 = vmatprep.subr.mxu0 0.0
    %1517 = vmatpush2.msra.mxu0 0.0
    %1518 = vmatprep.subr.mxu0 0.0
    %1519 = vmatpush2.msra.mxu0 0.0
    %1520 = vmatprep.subr.mxu0 0.0
    %1521 = vmatpush2.msra.mxu0 0.0
    %1522 = vmatprep.subr.mxu0 0.0
    %1523 = vmatpush2.msra.mxu0 0.0
    %1524 = vmatprep.subr.mxu0 0.0
    %1525 = vmatpush2.msra.mxu0 0.0
    %1526 = vmatprep.subr.mxu0 0.0
    %1527 = vmatpush2.msra.mxu0 0.0
    %1528 = vmatprep.subr.mxu0 0.0
    %1529 = vmatpush2.msra.mxu0 0.0
    %1530 = vmatprep.subr.mxu0 0.0
    %1531 = vmatpush2.msra.mxu0 0.0
    %1532 = vmatprep.subr.mxu0 0.0
    %1533 = vmatpush2.msra.mxu0 0.0
    %1534 = vmatprep.subr.mxu0 0.0
    %1535 = vmatpush2.msra.mxu0 0.0
    %1536 = vmatprep.subr.mxu0 0.0
    %1537 = vmatpush2.msra.mxu0 0.0
    %1538 = vmatprep.subr.mxu0 0.0
    %1539 = vmatpush2.msra.mxu0 0.0
    %1540 = vmatprep.mubr.f32.mxu0 0.0
    %1541 = vmatmul.mubr.f32.gmra.mxu0 %v1404
    %v1542 = vpop.f32.mrf.mxu0
    %v1543 = vadd.f32 %v349, %v1542
    %v1544 = vpop.f32.mrf.mxu0
    %v1545 = vadd.f32 %v351, %v1544
    %1546 = vdwg.mxu0
    %v1547 = vxor.u32 %v1472, 2147483648
    %v1548 = vxor.u32 %v1474, 2147483648
    %v1549 = vmul.f32 %v1547, 1.442695
    %v1550 = vpow.pop %v1549
    %v1551 = vmul.f32 %v1548, 1.442695
    %v1552 = vpow.pop %v1551
    %v1553 = vadd.f32 %v1550, 1.0
    %v1554 = vadd.f32 %v1552, 1.0
    %v1555 = vrcp.pop %v1553
    %v1556 = vmul.f32 1.0, %v1555
    %v1557 = vrcp.pop %v1554
    %v1558 = vmul.f32 1.0, %v1557
    %v1559 = vmul.f32 %v1556, %v1543
    %v1560 = vadd.f32 %v1545, %v1559
    %v1561 = vtanh.pop %v1560
    %v1562 = vsub.f32 %v1404, %v1561
    %v1563 = vmul.f32 %v1558, %v1562
    %v1564 = vadd.f32 %v1561, %v1563
    %1565 = vmatprep.subr.mxu0 %v420
    %1566 = vmatpush1.msra.mxu0 %v419
    %1567 = vmatprep.subr.mxu0 %v416
    %1568 = vmatpush1.msra.mxu0 %v415
    %1569 = vmatprep.subr.mxu0 %v412
    %1570 = vmatpush1.msra.mxu0 %v411
    %1571 = vmatprep.subr.mxu0 %v408
    %1572 = vmatpush1.msra.mxu0 %v407
    %1573 = vmatprep.subr.mxu0 %v404
    %1574 = vmatpush1.msra.mxu0 %v403
    %1575 = vmatprep.subr.mxu0 %v400
    %1576 = vmatpush1.msra.mxu0 %v399
    %1577 = vmatprep.subr.mxu0 %v396
    %1578 = vmatpush1.msra.mxu0 %v395
    %1579 = vmatprep.subr.mxu0 %v392
    %1580 = vmatpush1.msra.mxu0 %v391
    %1581 = vmatprep.subr.mxu0 %v388
    %1582 = vmatpush1.msra.mxu0 %v387
    %1583 = vmatprep.subr.mxu0 %v384
    %1584 = vmatpush1.msra.mxu0 %v383
    %1585 = vmatprep.subr.mxu0 %v380
    %1586 = vmatpush1.msra.mxu0 %v379
    %1587 = vmatprep.subr.mxu0 %v376
    %1588 = vmatpush1.msra.mxu0 %v375
    %1589 = vmatprep.subr.mxu0 %v372
    %1590 = vmatpush1.msra.mxu0 %v371
    %1591 = vmatprep.subr.mxu0 %v368
    %1592 = vmatpush1.msra.mxu0 %v367
    %1593 = vmatprep.subr.mxu0 %v364
    %1594 = vmatpush1.msra.mxu0 %v363
    %1595 = vmatprep.subr.mxu0 %v360
    %1596 = vmatpush1.msra.mxu0 %v359
    %1597 = vmatprep.subr.mxu0 0.0
    %1598 = vmatpush2.msra.mxu0 0.0
    %1599 = vmatprep.subr.mxu0 0.0
    %1600 = vmatpush2.msra.mxu0 0.0
    %1601 = vmatprep.subr.mxu0 0.0
    %1602 = vmatpush2.msra.mxu0 0.0
    %1603 = vmatprep.subr.mxu0 0.0
    %1604 = vmatpush2.msra.mxu0 0.0
    %1605 = vmatprep.subr.mxu0 0.0
    %1606 = vmatpush2.msra.mxu0 0.0
    %1607 = vmatprep.subr.mxu0 0.0
    %1608 = vmatpush2.msra.mxu0 0.0
    %1609 = vmatprep.subr.mxu0 0.0
    %1610 = vmatpush2.msra.mxu0 0.0
    %1611 = vmatprep.subr.mxu0 0.0
    %1612 = vmatpush2.msra.mxu0 0.0
    %1613 = vmatprep.subr.mxu0 0.0
    %1614 = vmatpush2.msra.mxu0 0.0
    %1615 = vmatprep.subr.mxu0 0.0
    %1616 = vmatpush2.msra.mxu0 0.0
    %1617 = vmatprep.subr.mxu0 0.0
    %1618 = vmatpush2.msra.mxu0 0.0
    %1619 = vmatprep.subr.mxu0 0.0
    %1620 = vmatpush2.msra.mxu0 0.0
    %1621 = vmatprep.subr.mxu0 0.0
    %1622 = vmatpush2.msra.mxu0 0.0
    %1623 = vmatprep.subr.mxu0 0.0
    %1624 = vmatpush2.msra.mxu0 0.0
    %1625 = vmatprep.subr.mxu0 0.0
    %1626 = vmatpush2.msra.mxu0 0.0
    %1627 = vmatprep.subr.mxu0 0.0
    %1628 = vmatpush2.msra.mxu0 0.0
    %1629 = vmatprep.mubr.f32.mxu0 0.0
    %1630 = vmatmul.mubr.f32.gmra.mxu0 %v1564
    %v1631 = vpop.f32.mrf.mxu0
    %v1632 = vadd.f32 %v236, %v1631
    %v1633 = vpop.f32.mrf.mxu0
    %v1634 = vadd.f32 %v238, %v1633
    %1635 = vdwg.mxu0
    %1636 = vmatprep.subr.mxu0 %v422
    %1637 = vmatpush1.msra.mxu0 %v421
    %1638 = vmatprep.subr.mxu0 %v418
    %1639 = vmatpush1.msra.mxu0 %v417
    %1640 = vmatprep.subr.mxu0 %v414
    %1641 = vmatpush1.msra.mxu0 %v413
    %1642 = vmatprep.subr.mxu0 %v410
    %1643 = vmatpush1.msra.mxu0 %v409
    %1644 = vmatprep.subr.mxu0 %v406
    %1645 = vmatpush1.msra.mxu0 %v405
    %1646 = vmatprep.subr.mxu0 %v402
    %1647 = vmatpush1.msra.mxu0 %v401
    %1648 = vmatprep.subr.mxu0 %v398
    %1649 = vmatpush1.msra.mxu0 %v397
    %1650 = vmatprep.subr.mxu0 %v394
    %1651 = vmatpush1.msra.mxu0 %v393
    %1652 = vmatprep.subr.mxu0 %v390
    %1653 = vmatpush1.msra.mxu0 %v389
    %1654 = vmatprep.subr.mxu0 %v386
    %1655 = vmatpush1.msra.mxu0 %v385
    %1656 = vmatprep.subr.mxu0 %v382
    %1657 = vmatpush1.msra.mxu0 %v381
    %1658 = vmatprep.subr.mxu0 %v378
    %1659 = vmatpush1.msra.mxu0 %v377
    %1660 = vmatprep.subr.mxu0 %v374
    %1661 = vmatpush1.msra.mxu0 %v373
    %1662 = vmatprep.subr.mxu0 %v370
    %1663 = vmatpush1.msra.mxu0 %v369
    %1664 = vmatprep.subr.mxu0 %v366
    %1665 = vmatpush1.msra.mxu0 %v365
    %1666 = vmatprep.subr.mxu0 %v362
    %1667 = vmatpush1.msra.mxu0 %v361
    %1668 = vmatprep.subr.mxu0 0.0
    %1669 = vmatpush2.msra.mxu0 0.0
    %1670 = vmatprep.subr.mxu0 0.0
    %1671 = vmatpush2.msra.mxu0 0.0
    %1672 = vmatprep.subr.mxu0 0.0
    %1673 = vmatpush2.msra.mxu0 0.0
    %1674 = vmatprep.subr.mxu0 0.0
    %1675 = vmatpush2.msra.mxu0 0.0
    %1676 = vmatprep.subr.mxu0 0.0
    %1677 = vmatpush2.msra.mxu0 0.0
    %1678 = vmatprep.subr.mxu0 0.0
    %1679 = vmatpush2.msra.mxu0 0.0
    %1680 = vmatprep.subr.mxu0 0.0
    %1681 = vmatpush2.msra.mxu0 0.0
    %1682 = vmatprep.subr.mxu0 0.0
    %1683 = vmatpush2.msra.mxu0 0.0
    %1684 = vmatprep.subr.mxu0 0.0
    %1685 = vmatpush2.msra.mxu0 0.0
    %1686 = vmatprep.subr.mxu0 0.0
    %1687 = vmatpush2.msra.mxu0 0.0
    %1688 = vmatprep.subr.mxu0 0.0
    %1689 = vmatpush2.msra.mxu0 0.0
    %1690 = vmatprep.subr.mxu0 0.0
    %1691 = vmatpush2.msra.mxu0 0.0
    %1692 = vmatprep.subr.mxu0 0.0
    %1693 = vmatpush2.msra.mxu0 0.0
    %1694 = vmatprep.subr.mxu0 0.0
    %1695 = vmatpush2.msra.mxu0 0.0
    %1696 = vmatprep.subr.mxu0 0.0
    %1697 = vmatpush2.msra.mxu0 0.0
    %1698 = vmatprep.subr.mxu0 0.0
    %1699 = vmatpush2.msra.mxu0 0.0
    %1700 = vmatprep.mubr.f32.mxu0 0.0
    %1701 = vmatmul.mubr.f32.gmra.mxu0 %v1564
    %v1702 = vpop.f32.mrf.mxu0
    %v1703 = vadd.f32 %v355, %v1702
    %v1704 = vpop.f32.mrf.mxu0
    %v1705 = vadd.f32 %v357, %v1704
    %1706 = vdwg.mxu0
    %v1707 = vxor.u32 %v1632, 2147483648
    %v1708 = vxor.u32 %v1634, 2147483648
    %v1709 = vmul.f32 %v1707, 1.442695
    %v1710 = vpow.pop %v1709
    %v1711 = vmul.f32 %v1708, 1.442695
    %v1712 = vpow.pop %v1711
    %v1713 = vadd.f32 %v1710, 1.0
    %v1714 = vadd.f32 %v1712, 1.0
    %v1715 = vrcp.pop %v1713
    %v1716 = vmul.f32 1.0, %v1715
    %v1717 = vrcp.pop %v1714
    %v1718 = vmul.f32 1.0, %v1717
    %v1719 = vmul.f32 %v1716, %v1703
    %v1720 = vadd.f32 %v1705, %v1719
    %v1721 = vtanh.pop %v1720
    %v1722 = vsub.f32 %v1564, %v1721
    %v1723 = vmul.f32 %v1718, %v1722
    %v1724 = vadd.f32 %v1721, %v1723
    %v1725 = vld [vmem:[%s4] sm:$0xff]
    %v1726 = vld [vmem:[%s4 + $0x8] sm:$0xff]
    %v1727 = vld [vmem:[%s4 + $0x10] sm:$0xff]
    %v1728 = vld [vmem:[%s4 + $0x18] sm:$0xff]
    %v1729 = vld [vmem:[%s4 + $0x20] sm:$0xff]
    %v1730 = vld [vmem:[%s4 + $0x28] sm:$0xff]
    %v1731 = vld [vmem:[%s4 + $0x30] sm:$0xff]
    %v1732 = vld [vmem:[%s4 + $0x38] sm:$0xff]
    %v1733 = vld [vmem:[%s4 + $0x40] sm:$0xff]
    %v1734 = vld [vmem:[%s4 + $0x48] sm:$0xff]
    %v1735 = vld [vmem:[%s4 + $0x50] sm:$0xff]
    %v1736 = vld [vmem:[%s4 + $0x58] sm:$0xff]
    %v1737 = vld [vmem:[%s4 + $0x60] sm:$0xff]
    %v1738 = vld [vmem:[%s4 + $0x68] sm:$0xff]
    %v1739 = vld [vmem:[%s4 + $0x70] sm:$0xff]
    %v1740 = vld [vmem:[%s4 + $0x78] sm:$0xff]
    %v1741 = vld [vmem:[%s5] sm:$0x1]
    %v1743 = vlaneseq
    %v1744 = vshrl.u32 %v1743, 7
    %v1745 = vsub.s32 0, %v1744
    %v1746 = vrot.slane %v1741, %v1745
    %1748 = vmatprep.subr.mxu0 0.0
    %1749 = vmatpush1.msra.mxu0 %v1740
    %1750 = vmatprep.subr.mxu0 0.0
    %1751 = vmatpush1.msra.mxu0 %v1739
    %1752 = vmatprep.subr.mxu0 0.0
    %1753 = vmatpush1.msra.mxu0 %v1738
    %1754 = vmatprep.subr.mxu0 0.0
    %1755 = vmatpush1.msra.mxu0 %v1737
    %1756 = vmatprep.subr.mxu0 0.0
    %1757 = vmatpush1.msra.mxu0 %v1736
    %1758 = vmatprep.subr.mxu0 0.0
    %1759 = vmatpush1.msra.mxu0 %v1735
    %1760 = vmatprep.subr.mxu0 0.0
    %1761 = vmatpush1.msra.mxu0 %v1734
    %1762 = vmatprep.subr.mxu0 0.0
    %1763 = vmatpush1.msra.mxu0 %v1733
    %1764 = vmatprep.subr.mxu0 0.0
    %1765 = vmatpush1.msra.mxu0 %v1732
    %1766 = vmatprep.subr.mxu0 0.0
    %1767 = vmatpush1.msra.mxu0 %v1731
    %1768 = vmatprep.subr.mxu0 0.0
    %1769 = vmatpush1.msra.mxu0 %v1730
    %1770 = vmatprep.subr.mxu0 0.0
    %1771 = vmatpush1.msra.mxu0 %v1729
    %1772 = vmatprep.subr.mxu0 0.0
    %1773 = vmatpush1.msra.mxu0 %v1728
    %1774 = vmatprep.subr.mxu0 0.0
    %1775 = vmatpush1.msra.mxu0 %v1727
    %1776 = vmatprep.subr.mxu0 0.0
    %1777 = vmatpush1.msra.mxu0 %v1726
    %1778 = vmatprep.subr.mxu0 0.0
    %1779 = vmatpush1.msra.mxu0 %v1725
    %1780 = vmatprep.subr.mxu0 0.0
    %1781 = vmatpush2.msra.mxu0 0.0
    %1782 = vmatprep.subr.mxu0 0.0
    %1783 = vmatpush2.msra.mxu0 0.0
    %1784 = vmatprep.subr.mxu0 0.0
    %1785 = vmatpush2.msra.mxu0 0.0
    %1786 = vmatprep.subr.mxu0 0.0
    %1787 = vmatpush2.msra.mxu0 0.0
    %1788 = vmatprep.subr.mxu0 0.0
    %1789 = vmatpush2.msra.mxu0 0.0
    %1790 = vmatprep.subr.mxu0 0.0
    %1791 = vmatpush2.msra.mxu0 0.0
    %1792 = vmatprep.subr.mxu0 0.0
    %1793 = vmatpush2.msra.mxu0 0.0
    %1794 = vmatprep.subr.mxu0 0.0
    %1795 = vmatpush2.msra.mxu0 0.0
    %1796 = vmatprep.subr.mxu0 0.0
    %1797 = vmatpush2.msra.mxu0 0.0
    %1798 = vmatprep.subr.mxu0 0.0
    %1799 = vmatpush2.msra.mxu0 0.0
    %1800 = vmatprep.subr.mxu0 0.0
    %1801 = vmatpush2.msra.mxu0 0.0
    %1802 = vmatprep.subr.mxu0 0.0
    %1803 = vmatpush2.msra.mxu0 0.0
    %1804 = vmatprep.subr.mxu0 0.0
    %1805 = vmatpush2.msra.mxu0 0.0
    %1806 = vmatprep.subr.mxu0 0.0
    %1807 = vmatpush2.msra.mxu0 0.0
    %1808 = vmatprep.subr.mxu0 0.0
    %1809 = vmatpush2.msra.mxu0 0.0
    %1810 = vmatprep.subr.mxu0 0.0
    %1811 = vmatpush2.msra.mxu0 0.0
    %1812 = vmatprep.mubr.f32.mxu0 0.0
    %1813 = vmatmul.mubr.f32.gmra.mxu0 %v1724
    %v1814 = vpop.f32.mrf.mxu0
    %v1815 = vadd.f32 %v1746, %v1814
    %v1816 = vpop.f32.mrf.mxu0
    %1817 = vdwg.mxu0
    %vm1818 = vcmask 48128
    %1819 = vst.msk [vmem:[%s6] sm:$0xff] %vm1818, %v1815
    // Predicated region
    $region30: #{my_gru_forward.1} parent=1 // pred_check
      _
    $region31: #{my_gru_forward.1} parent=1 // pred_check_branch
      %1821 = sbr.rel (0) target = $region33
    $region32: #{my_gru_forward.1} parent=1 // pred_region
      _
    $region33: #{my_gru_forward.1} parent=1 // pred_fallthru
      _
    // Predicated region
    $region34: #{my_gru_forward.1} parent=1 // pred_check
      _
    $region35: #{my_gru_forward.1} parent=1 // pred_check_branch
      %1823 = sbr.rel (0) target = $region37
    $region36: #{my_gru_forward.1} parent=1 // pred_region
      _
    $region37: #{my_gru_forward.1} parent=1 // pred_fallthru
      _
    %1824 = vsyncpa [#allocation3], 1

</llo_original>
